<compile_context>
chip_gen: v7x
topology: tpu7x:2x2x1
jax: 0.10.0
libtpu: 0.0.40
codegen_flags: <defaults>
</compile_context>

<pallas_src>
import jax
import jax.numpy as jnp
import numpy as np
from jax.experimental import pallas as pl
from jax.experimental.pallas import tpu as pltpu

EPS = 1e-5


def gnf_kernel(x_ref, a_ref, w1_ref, w2_ref, vec_ref, out_ref):
    f32 = jnp.float32
    bf16 = jnp.bfloat16

    x = x_ref[...]          # (N, P) f32
    a = a_ref[...]          # (N, N) bf16  (normalized adjacency, MXU operand)
    w1 = w1_ref[...]        # (P, P) bf16
    w2 = w2_ref[...]        # (P, P) bf16

    # Packed per-feature vectors: rows = [g0, be0, b1, g1, be1, b2, g2, be2]  -- (1, P) each.
    g0, be0 = vec_ref[0:1, :], vec_ref[1:2, :]
    b1, g1, be1 = vec_ref[2:3, :], vec_ref[3:4, :], vec_ref[4:5, :]
    b2, g2, be2 = vec_ref[5:6, :], vec_ref[6:7, :], vec_ref[7:8, :]

    inv_n = 1.0 / x.shape[0]

    def bn(v, gamma, beta):
        # Fused single-pass training-mode BatchNorm: one (sum, sum-of-squares) cross-sublane
        # reduction pair (XLU) instead of two full passes; rsqrt goes to the EUP; all math f32.
        s1 = jnp.sum(v, axis=0, keepdims=True)
        s2 = jnp.sum(v * v, axis=0, keepdims=True)
        mean = s1 * inv_n
        var = jnp.maximum(s2 * inv_n - mean * mean, 0.0)
        scale = gamma * jax.lax.rsqrt(var + EPS)          # (1, P), broadcast over sublanes
        return (v - mean) * scale + beta

    xn = bn(x, g0, be0)

    # GCN layer 1: BN1(relu(A_hat @ (xn @ W1) + b1)) -- bf16 MXU inputs, f32 accumulation.
    h = jnp.dot(xn.astype(bf16), w1, preferred_element_type=f32)
    h = jnp.dot(a, h.astype(bf16), preferred_element_type=f32) + b1
    h = bn(jnp.maximum(h, 0.0), g1, be1)

    # GCN layer 2: BN2(relu(A_hat @ (h @ W2) + b2))
    h = jnp.dot(h.astype(bf16), w2, preferred_element_type=f32)
    h = jnp.dot(a, h.astype(bf16), preferred_element_type=f32) + b2
    h = bn(jnp.maximum(h, 0.0), g2, be2)

    out_ref[...] = xn + h          # residual; lane-dense (N, P) f32 store


def _round_up(n, m):
    return (n + m - 1) // m * m


def graphnet_feature(x, a_hat, params):
    """x: (B, N, C) f32, a_hat: (B, N, N) f32 normalized adjacency, params: dict of weights."""
    f32, bf16 = jnp.float32, jnp.bfloat16
    B, N, C = x.shape
    H = params["w1"].shape[1]
    assert C == H, "residual `BN0(x) + h` requires c_in == hidden_size (as in the torch module)"
    P = _round_up(max(C, H), 128)   # lane-dense feature width

    def pad2(m):
        out = jnp.zeros((P, P), f32)
        return out.at[:m.shape[0], :m.shape[1]].set(m.astype(f32))

    def padv(v):
        return jnp.zeros((P,), f32).at[:v.shape[0]].set(v.astype(f32))

    # Lane-pad inputs / params with zeros (padded lanes provably stay zero through the net:
    # zero columns stay zero through matmul, BN with gamma=beta=0, relu, and the residual).
    x_p = jnp.zeros((B, N, P), f32).at[:, :, :C].set(x.astype(f32))
    w1_p = pad2(params["w1"]).astype(bf16)
    w2_p = pad2(params["w2"]).astype(bf16)
    a_bf = a_hat.astype(bf16)                    # dominant operand -> half the HBM/VMEM bytes

    # Pack the 8 per-feature vectors into a single (8, P) array (one DMA, one sublane tile).
    vecs = jnp.stack([padv(params["g0"]), padv(params["be0"]),
                      padv(params["b1"]), padv(params["g1"]), padv(params["be1"]),
                      padv(params["b2"]), padv(params["g2"]), padv(params["be2"])])

    flops = B * (4 * N * P * P + 4 * N * N * P)          # 2 feature dots + 2 adjacency dots
    bytes_accessed = int(x_p.size) * 4 + int(a_bf.size) * 2 + int(w1_p.size) * 2 \
        + int(w2_p.size) * 2 + int(vecs.size) * 4 + B * N * P * 4
    cost = pl.CostEstimate(flops=flops, transcendentals=3 * B * P,
                           bytes_accessed=bytes_accessed)

    out = pl.pallas_call(
        gnf_kernel,
        out_shape=jax.ShapeDtypeStruct((B, N, P), f32),
        grid_spec=pltpu.PrefetchScalarGridSpec(
            num_scalar_prefetch=0,
            grid=(B,),
            in_specs=[
                pl.BlockSpec((None, N, P), lambda b: (b, 0, 0)),   # x      (per-graph block)
                pl.BlockSpec((None, N, N), lambda b: (b, 0, 0)),   # A_hat  (bf16, per-graph)
                pl.BlockSpec((P, P), lambda b: (0, 0)),            # W1     (VMEM-resident)
                pl.BlockSpec((P, P), lambda b: (0, 0)),            # W2     (VMEM-resident)
                pl.BlockSpec((8, P), lambda b: (0, 0)),            # packed bias/BN vectors
            ],
            out_specs=pl.BlockSpec((None, N, P), lambda b: (b, 0, 0)),
        ),
        compiler_params=pltpu.CompilerParams(
            dimension_semantics=("parallel",),        # batch axis -> both TCs on v7x
            vmem_limit_bytes=48 * 1024 * 1024,        # headroom, still < v7x's 64 MiB physical
        ),
        cost_estimate=cost,
    )(x_p, a_bf, w1_p, w2_p, vecs)

    return out[:, :, :H]


def build_normalized_adjacency(edge_index, num_nodes):
    """Dense GCN normalization: D^-1/2 (A + I) D^-1/2 (undirected, with self loops)."""
    src, dst = edge_index
    A = jnp.zeros((num_nodes, num_nodes), jnp.float32)
    A = A.at[src, dst].set(1.0)
    A = A.at[dst, src].set(1.0)
    A = jnp.minimum(A + jnp.eye(num_nodes, dtype=jnp.float32), 1.0)
    deg = jnp.sum(A, axis=1)
    dinv = jax.lax.rsqrt(jnp.maximum(deg, 1e-12))
    return dinv[:, None] * A * dinv[None, :]


def reference(x, a_hat, params):
    """Pure-JAX reference mirroring the kernel's precision policy (bf16 dot inputs, f32 accum)."""
    f32, bf16 = jnp.float32, jnp.bfloat16

    def bn(v, g, b):
        m = jnp.mean(v, axis=0, keepdims=True)
        var = jnp.mean((v - m) ** 2, axis=0, keepdims=True)
        return g * (v - m) * jax.lax.rsqrt(var + EPS) + b

    w1 = params["w1"].astype(bf16)
    w2 = params["w2"].astype(bf16)

    def one(xg, ag):
        a = ag.astype(bf16)
        xn = bn(xg, params["g0"], params["be0"])
        h = jnp.dot(xn.astype(bf16), w1, preferred_element_type=f32)
        h = jnp.dot(a, h.astype(bf16), preferred_element_type=f32) + params["b1"]
        h = bn(jnp.maximum(h, 0.0), params["g1"], params["be1"])
        h = jnp.dot(h.astype(bf16), w2, preferred_element_type=f32)
        h = jnp.dot(a, h.astype(bf16), preferred_element_type=f32) + params["b2"]
        h = bn(jnp.maximum(h, 0.0), params["g2"], params["be2"])
        return xn + h

    return jax.vmap(one)(x, a_hat)


if __name__ == "__main__":
    key = jax.random.PRNGKey(0)
    B = 4            # graphs per batch (grid axis)
    N = 128          # nodes per graph (MXU-sized M dim)
    C_IN = 32        # c_in
    HIDDEN = 32      # hidden_size (== c_in, required by the residual)
    E = 256          # directed edges per graph (symmetrized in the builder)

    ks = jax.random.split(key, 16)
    x = jax.random.normal(ks[0], (B, N, C_IN), jnp.float32)

    adjs = []
    for b in range(B):
        ksrc, kdst = jax.random.split(ks[1 + b])
        src = jax.random.randint(ksrc, (E,), 0, N, jnp.int32)
        dst = jax.random.randint(kdst, (E,), 0, N, jnp.int32)
        adjs.append(build_normalized_adjacency(jnp.stack([src, dst]), N))
    a_hat = jnp.stack(adjs)

    glorot1 = float(np.sqrt(6.0 / (C_IN + HIDDEN)))
    glorot2 = float(np.sqrt(6.0 / (2 * HIDDEN)))
    params = {
        "w1": jax.random.uniform(ks[8], (C_IN, HIDDEN), jnp.float32, -glorot1, glorot1),
        "b1": jnp.zeros((HIDDEN,), jnp.float32),
        "w2": jax.random.uniform(ks[9], (HIDDEN, HIDDEN), jnp.float32, -glorot2, glorot2),
        "b2": jnp.zeros((HIDDEN,), jnp.float32),
        "g0": 1.0 + 0.1 * jax.random.normal(ks[10], (C_IN,), jnp.float32),
        "be0": 0.1 * jax.random.normal(ks[11], (C_IN,), jnp.float32),
        "g1": 1.0 + 0.1 * jax.random.normal(ks[12], (HIDDEN,), jnp.float32),
        "be1": 0.1 * jax.random.normal(ks[13], (HIDDEN,), jnp.float32),
        "g2": 1.0 + 0.1 * jax.random.normal(ks[14], (HIDDEN,), jnp.float32),
        "be2": 0.1 * jax.random.normal(ks[15], (HIDDEN,), jnp.float32),
    }

    out = jax.block_until_ready(graphnet_feature(x, a_hat, params))
    ref = jax.block_until_ready(reference(x, a_hat, params))
    np.testing.assert_allclose(np.asarray(out), np.asarray(ref), rtol=1e-3, atol=1e-3)

    print("KERNEL_OK")
</pallas_src>

<mosaic_0001>
module attributes {stable_mosaic.version = 11 : i64} {
  func.func @gnf_kernel(%arg0: i32, %arg1: memref<1x128x128xf32, #tpu.memory_space<vmem>>, %arg2: memref<1x128x128xbf16, #tpu.memory_space<vmem>>, %arg3: memref<128x128xbf16, #tpu.memory_space<vmem>>, %arg4: memref<128x128xbf16, #tpu.memory_space<vmem>>, %arg5: memref<8x128xf32, #tpu.memory_space<vmem>>, %arg6: memref<1x128x128xf32, #tpu.memory_space<vmem>>) attributes {dimension_semantics = [#tpu.dimension_semantics<parallel>], iteration_bounds = array<i64: 4>, scalar_prefetch = 0 : i64, scratch_operands = 0 : i64, tpu.core_type = #tpu.core_type<tc>, window_params = [{transform_indices = @transform_0, window_bounds = array<i64: 1, 128, 128>}, {transform_indices = @transform_1, window_bounds = array<i64: 1, 128, 128>}, {pipeline_mode = #tpu.pipeline_mode<synchronous>, transform_indices = @transform_2, window_bounds = array<i64: 128, 128>}, {pipeline_mode = #tpu.pipeline_mode<synchronous>, transform_indices = @transform_3, window_bounds = array<i64: 128, 128>}, {pipeline_mode = #tpu.pipeline_mode<synchronous>, transform_indices = @transform_4, window_bounds = array<i64: 8, 128>}, {transform_indices = @transform_5, window_bounds = array<i64: 1, 128, 128>}]} {
    %c0 = arith.constant 0 : index
    %c0_0 = arith.constant 0 : index
    %c0_1 = arith.constant 0 : index
    %0 = vector.load %arg1[%c0, %c0_0, %c0_1] : memref<1x128x128xf32, #tpu.memory_space<vmem>>, vector<1x128x128xf32>
    %1 = vector.shape_cast %0 : vector<1x128x128xf32> to vector<128x128xf32>
    %c0_2 = arith.constant 0 : index
    %c0_3 = arith.constant 0 : index
    %c0_4 = arith.constant 0 : index
    %2 = vector.load %arg2[%c0_2, %c0_3, %c0_4] : memref<1x128x128xbf16, #tpu.memory_space<vmem>>, vector<1x128x128xbf16>
    %3 = vector.shape_cast %2 : vector<1x128x128xbf16> to vector<128x128xbf16>
    %c0_5 = arith.constant 0 : index
    %c0_6 = arith.constant 0 : index
    %4 = vector.load %arg3[%c0_5, %c0_6] : memref<128x128xbf16, #tpu.memory_space<vmem>>, vector<128x128xbf16>
    %c0_7 = arith.constant 0 : index
    %c0_8 = arith.constant 0 : index
    %5 = vector.load %arg4[%c0_7, %c0_8] : memref<128x128xbf16, #tpu.memory_space<vmem>>, vector<128x128xbf16>
    %c0_9 = arith.constant 0 : index
    %c0_10 = arith.constant 0 : index
    %6 = vector.load %arg5[%c0_9, %c0_10] : memref<8x128xf32, #tpu.memory_space<vmem>>, vector<1x128xf32>
    %c1 = arith.constant 1 : index
    %c0_11 = arith.constant 0 : index
    %7 = vector.load %arg5[%c1, %c0_11] : memref<8x128xf32, #tpu.memory_space<vmem>>, vector<1x128xf32>
    %c2 = arith.constant 2 : index
    %c0_12 = arith.constant 0 : index
    %8 = vector.load %arg5[%c2, %c0_12] : memref<8x128xf32, #tpu.memory_space<vmem>>, vector<1x128xf32>
    %c3 = arith.constant 3 : index
    %c0_13 = arith.constant 0 : index
    %9 = vector.load %arg5[%c3, %c0_13] : memref<8x128xf32, #tpu.memory_space<vmem>>, vector<1x128xf32>
    %c4 = arith.constant 4 : index
    %c0_14 = arith.constant 0 : index
    %10 = vector.load %arg5[%c4, %c0_14] : memref<8x128xf32, #tpu.memory_space<vmem>>, vector<1x128xf32>
    %c5 = arith.constant 5 : index
    %c0_15 = arith.constant 0 : index
    %11 = vector.load %arg5[%c5, %c0_15] : memref<8x128xf32, #tpu.memory_space<vmem>>, vector<1x128xf32>
    %c6 = arith.constant 6 : index
    %c0_16 = arith.constant 0 : index
    %12 = vector.load %arg5[%c6, %c0_16] : memref<8x128xf32, #tpu.memory_space<vmem>>, vector<1x128xf32>
    %c7 = arith.constant 7 : index
    %c0_17 = arith.constant 0 : index
    %13 = vector.load %arg5[%c7, %c0_17] : memref<8x128xf32, #tpu.memory_space<vmem>>, vector<1x128xf32>
    %cst = arith.constant dense<0.000000e+00> : vector<128xf32>
    %14 = vector.multi_reduction <add>, %1, %cst [0] : vector<128x128xf32> to vector<128xf32>
    %15 = vector.shape_cast %14 : vector<128xf32> to vector<1x128xf32>
    %16 = arith.mulf %1, %1 : vector<128x128xf32>
    %cst_18 = arith.constant dense<0.000000e+00> : vector<128xf32>
    %17 = vector.multi_reduction <add>, %16, %cst_18 [0] : vector<128x128xf32> to vector<128xf32>
    %18 = vector.shape_cast %17 : vector<128xf32> to vector<1x128xf32>
    %cst_19 = arith.constant 7.812500e-03 : f32
    %19 = vector.broadcast %cst_19 : f32 to vector<1x128xf32>
    %20 = arith.mulf %15, %19 : vector<1x128xf32>
    %cst_20 = arith.constant 7.812500e-03 : f32
    %21 = vector.broadcast %cst_20 : f32 to vector<1x128xf32>
    %22 = arith.mulf %18, %21 : vector<1x128xf32>
    %23 = arith.mulf %20, %20 : vector<1x128xf32>
    %24 = arith.subf %22, %23 : vector<1x128xf32>
    %cst_21 = arith.constant 0.000000e+00 : f32
    %25 = vector.broadcast %cst_21 : f32 to vector<1x128xf32>
    %26 = arith.maximumf %24, %25 : vector<1x128xf32>
    %cst_22 = arith.constant 9.99999974E-6 : f32
    %27 = vector.broadcast %cst_22 : f32 to vector<1x128xf32>
    %28 = arith.addf %26, %27 : vector<1x128xf32>
    %29 = math.rsqrt %28 : vector<1x128xf32>
    %30 = arith.mulf %6, %29 : vector<1x128xf32>
    %31 = vector.broadcast %20 : vector<1x128xf32> to vector<128x128xf32>
    %32 = arith.subf %1, %31 : vector<128x128xf32>
    %33 = vector.broadcast %30 : vector<1x128xf32> to vector<128x128xf32>
    %34 = arith.mulf %32, %33 : vector<128x128xf32>
    %35 = vector.broadcast %7 : vector<1x128xf32> to vector<128x128xf32>
    %36 = arith.addf %34, %35 : vector<128x128xf32>
    %37 = arith.truncf %36 : vector<128x128xf32> to vector<128x128xbf16>
    %cst_23 = arith.constant dense<0.000000e+00> : vector<128x128xf32>
    %38 = tpu.matmul %37, %4, %cst_23 {dimension_numbers = #tpu.dot_dimension_numbers<[1], [0], [0], [1], [0, 0, 1, 1], [], []>} : vector<128x128xbf16>, vector<128x128xbf16>, vector<128x128xf32> -> vector<128x128xf32>
    %39 = arith.truncf %38 : vector<128x128xf32> to vector<128x128xbf16>
    %cst_24 = arith.constant dense<0.000000e+00> : vector<128x128xf32>
    %40 = tpu.matmul %3, %39, %cst_24 {dimension_numbers = #tpu.dot_dimension_numbers<[1], [0], [0], [1], [0, 0, 1, 1], [], []>} : vector<128x128xbf16>, vector<128x128xbf16>, vector<128x128xf32> -> vector<128x128xf32>
    %41 = vector.broadcast %8 : vector<1x128xf32> to vector<128x128xf32>
    %42 = arith.addf %40, %41 : vector<128x128xf32>
    %cst_25 = arith.constant 0.000000e+00 : f32
    %43 = vector.broadcast %cst_25 : f32 to vector<128x128xf32>
    %44 = arith.maximumf %42, %43 : vector<128x128xf32>
    %cst_26 = arith.constant dense<0.000000e+00> : vector<128xf32>
    %45 = vector.multi_reduction <add>, %44, %cst_26 [0] : vector<128x128xf32> to vector<128xf32>
    %46 = vector.shape_cast %45 : vector<128xf32> to vector<1x128xf32>
    %47 = arith.mulf %44, %44 : vector<128x128xf32>
    %cst_27 = arith.constant dense<0.000000e+00> : vector<128xf32>
    %48 = vector.multi_reduction <add>, %47, %cst_27 [0] : vector<128x128xf32> to vector<128xf32>
    %49 = vector.shape_cast %48 : vector<128xf32> to vector<1x128xf32>
    %cst_28 = arith.constant 7.812500e-03 : f32
    %50 = vector.broadcast %cst_28 : f32 to vector<1x128xf32>
    %51 = arith.mulf %46, %50 : vector<1x128xf32>
    %cst_29 = arith.constant 7.812500e-03 : f32
    %52 = vector.broadcast %cst_29 : f32 to vector<1x128xf32>
    %53 = arith.mulf %49, %52 : vector<1x128xf32>
    %54 = arith.mulf %51, %51 : vector<1x128xf32>
    %55 = arith.subf %53, %54 : vector<1x128xf32>
    %cst_30 = arith.constant 0.000000e+00 : f32
    %56 = vector.broadcast %cst_30 : f32 to vector<1x128xf32>
    %57 = arith.maximumf %55, %56 : vector<1x128xf32>
    %cst_31 = arith.constant 9.99999974E-6 : f32
    %58 = vector.broadcast %cst_31 : f32 to vector<1x128xf32>
    %59 = arith.addf %57, %58 : vector<1x128xf32>
    %60 = math.rsqrt %59 : vector<1x128xf32>
    %61 = arith.mulf %9, %60 : vector<1x128xf32>
    %62 = vector.broadcast %51 : vector<1x128xf32> to vector<128x128xf32>
    %63 = arith.subf %44, %62 : vector<128x128xf32>
    %64 = vector.broadcast %61 : vector<1x128xf32> to vector<128x128xf32>
    %65 = arith.mulf %63, %64 : vector<128x128xf32>
    %66 = vector.broadcast %10 : vector<1x128xf32> to vector<128x128xf32>
    %67 = arith.addf %65, %66 : vector<128x128xf32>
    %68 = arith.truncf %67 : vector<128x128xf32> to vector<128x128xbf16>
    %cst_32 = arith.constant dense<0.000000e+00> : vector<128x128xf32>
    %69 = tpu.matmul %68, %5, %cst_32 {dimension_numbers = #tpu.dot_dimension_numbers<[1], [0], [0], [1], [0, 0, 1, 1], [], []>} : vector<128x128xbf16>, vector<128x128xbf16>, vector<128x128xf32> -> vector<128x128xf32>
    %70 = arith.truncf %69 : vector<128x128xf32> to vector<128x128xbf16>
    %cst_33 = arith.constant dense<0.000000e+00> : vector<128x128xf32>
    %71 = tpu.matmul %3, %70, %cst_33 {dimension_numbers = #tpu.dot_dimension_numbers<[1], [0], [0], [1], [0, 0, 1, 1], [], []>} : vector<128x128xbf16>, vector<128x128xbf16>, vector<128x128xf32> -> vector<128x128xf32>
    %72 = vector.broadcast %11 : vector<1x128xf32> to vector<128x128xf32>
    %73 = arith.addf %71, %72 : vector<128x128xf32>
    %cst_34 = arith.constant 0.000000e+00 : f32
    %74 = vector.broadcast %cst_34 : f32 to vector<128x128xf32>
    %75 = arith.maximumf %73, %74 : vector<128x128xf32>
    %cst_35 = arith.constant dense<0.000000e+00> : vector<128xf32>
    %76 = vector.multi_reduction <add>, %75, %cst_35 [0] : vector<128x128xf32> to vector<128xf32>
    %77 = vector.shape_cast %76 : vector<128xf32> to vector<1x128xf32>
    %78 = arith.mulf %75, %75 : vector<128x128xf32>
    %cst_36 = arith.constant dense<0.000000e+00> : vector<128xf32>
    %79 = vector.multi_reduction <add>, %78, %cst_36 [0] : vector<128x128xf32> to vector<128xf32>
    %80 = vector.shape_cast %79 : vector<128xf32> to vector<1x128xf32>
    %cst_37 = arith.constant 7.812500e-03 : f32
    %81 = vector.broadcast %cst_37 : f32 to vector<1x128xf32>
    %82 = arith.mulf %77, %81 : vector<1x128xf32>
    %cst_38 = arith.constant 7.812500e-03 : f32
    %83 = vector.broadcast %cst_38 : f32 to vector<1x128xf32>
    %84 = arith.mulf %80, %83 : vector<1x128xf32>
    %85 = arith.mulf %82, %82 : vector<1x128xf32>
    %86 = arith.subf %84, %85 : vector<1x128xf32>
    %cst_39 = arith.constant 0.000000e+00 : f32
    %87 = vector.broadcast %cst_39 : f32 to vector<1x128xf32>
    %88 = arith.maximumf %86, %87 : vector<1x128xf32>
    %cst_40 = arith.constant 9.99999974E-6 : f32
    %89 = vector.broadcast %cst_40 : f32 to vector<1x128xf32>
    %90 = arith.addf %88, %89 : vector<1x128xf32>
    %91 = math.rsqrt %90 : vector<1x128xf32>
    %92 = arith.mulf %12, %91 : vector<1x128xf32>
    %93 = vector.broadcast %82 : vector<1x128xf32> to vector<128x128xf32>
    %94 = arith.subf %75, %93 : vector<128x128xf32>
    %95 = vector.broadcast %92 : vector<1x128xf32> to vector<128x128xf32>
    %96 = arith.mulf %94, %95 : vector<128x128xf32>
    %97 = vector.broadcast %13 : vector<1x128xf32> to vector<128x128xf32>
    %98 = arith.addf %96, %97 : vector<128x128xf32>
    %99 = arith.addf %36, %98 : vector<128x128xf32>
    %c0_41 = arith.constant 0 : index
    %c0_42 = arith.constant 0 : index
    %c0_43 = arith.constant 0 : index
    %100 = vector.load %arg6[%c0_41, %c0_42, %c0_43] : memref<1x128x128xf32, #tpu.memory_space<vmem>>, vector<1x128x128xf32>
    %101 = vector.shape_cast %100 : vector<1x128x128xf32> to vector<128x128xf32>
    %102 = vector.shape_cast %99 : vector<128x128xf32> to vector<1x128x128xf32>
    tpu.vector_store %arg6[%c0_41, %c0_42, %c0_43], %102 {strides = array<i32>} : memref<1x128x128xf32, #tpu.memory_space<vmem>>, vector<1x128x128xf32>,
    return
  }
  func.func @transform_0(%arg0: i32) -> (i32, i32, i32) {
    %c0_i32 = arith.constant 0 : i32
    %c0_i32_0 = arith.constant 0 : i32
    %c0_i32_1 = arith.constant 0 : i32
    return %arg0, %c0_i32, %c0_i32_0 : i32, i32, i32
  }
  func.func @transform_1(%arg0: i32) -> (i32, i32, i32) {
    %c0_i32 = arith.constant 0 : i32
    %c0_i32_0 = arith.constant 0 : i32
    %c0_i32_1 = arith.constant 0 : i32
    return %arg0, %c0_i32, %c0_i32_0 : i32, i32, i32
  }
  func.func @transform_2(%arg0: i32) -> (i32, i32) {
    %c0_i32 = arith.constant 0 : i32
    %c0_i32_0 = arith.constant 0 : i32
    %c0_i32_1 = arith.constant 0 : i32
    return %c0_i32, %c0_i32_0 : i32, i32
  }
  func.func @transform_3(%arg0: i32) -> (i32, i32) {
    %c0_i32 = arith.constant 0 : i32
    %c0_i32_0 = arith.constant 0 : i32
    %c0_i32_1 = arith.constant 0 : i32
    return %c0_i32, %c0_i32_0 : i32, i32
  }
  func.func @transform_4(%arg0: i32) -> (i32, i32) {
    %c0_i32 = arith.constant 0 : i32
    %c0_i32_0 = arith.constant 0 : i32
    %c0_i32_1 = arith.constant 0 : i32
    return %c0_i32, %c0_i32_0 : i32, i32
  }
  func.func @transform_5(%arg0: i32) -> (i32, i32, i32) {
    %c0_i32 = arith.constant 0 : i32
    %c0_i32_0 = arith.constant 0 : i32
    %c0_i32_1 = arith.constant 0 : i32
    return %arg0, %c0_i32, %c0_i32_0 : i32, i32, i32
  }
}

</mosaic_0001>

<llo_original>
// kernel: tpu_custom_call.1
$region0: #{tpu_custom_call.1}
  #allocation0 [shape = 'u32[]', space=smem, size = 0x4, offset = 0x4, fixed_abs, tag = 'smem constant byte address 0x4 - core index']
  #allocation1 [shape = 'u32[144,128]{1,0:T(1,128)}', space=vmem, size = 0x12000, scoped, tag = 'internal scratch']
  %s0 = inlined_call_operand.hbm [shape: f32[4,128,128], index: 0, kind: input, shape index: {}]
  %s1 = inlined_call_operand.hbm [shape: bf16[4,128,128], index: 1, kind: input, shape index: {}]
  %s2 = inlined_call_operand.hbm [shape: bf16[128,128], index: 2, kind: input, shape index: {}]
  %s3 = inlined_call_operand.hbm [shape: bf16[128,128], index: 3, kind: input, shape index: {}]
  %s4 = inlined_call_operand.vmem [shape: f32[8,128], index: 4, kind: input, shape index: {}]
  %s5 = inlined_call_operand.hbm [shape: f32[4,128,128], index: 5, kind: output, shape index: {}]
  %s6 = sld [smem:[#allocation0]]
  $region69: #{tpu_custom_call.1} parent=0
    _
  %s8 = ssub.s32 1, %s6
  %s9 = scalar_select 0, %s8, %s6
  $region1: #{tpu_custom_call.1} parent=0
    #allocation2 [shape = 'u8[131072]{0}', space=vmem, size = 0x20000, scoped, tag = 'input window, operand 0']
    #allocation3 [shape = 's32[2]{0}', space=sflag, size = 0x8, scoped, tag = 'scoped memory for tpu_custom_call.1']
    #allocation4 [shape = 's32[2]{0}', space=sflag, size = 0x8, scoped, tag = 'scoped memory for tpu_custom_call.1']
    #allocation5 [shape = 'u8[65536]{0}', space=vmem, size = 0x10000, scoped, tag = 'input window, operand 1']
    #allocation6 [shape = 's32[2]{0}', space=sflag, size = 0x8, scoped, tag = 'scoped memory for tpu_custom_call.1']
    #allocation7 [shape = 'u8[32768]{0}', space=vmem, size = 0x8000, scoped, tag = 'input window, operand 2, single buffered']
    #allocation8 [shape = 'u8[32768]{0}', space=vmem, size = 0x8000, scoped, tag = 'input window, operand 3, single buffered']
    #allocation9 [shape = 's32[1]{0}', space=sflag, size = 0x4, scoped, tag = 'scoped memory for tpu_custom_call.1']
    #allocation10 [shape = 'u8[131072]{0}', space=vmem, size = 0x20000, scoped, tag = 'output window, operand 0']
    %10 = vsyncpa [#allocation3], 0
    %s11 = scalar_lea.sflag [#allocation3], 1
    %12 = vsyncpa %s11, 0
    %13 = vsyncpa [#allocation6], 0
    %s14 = scalar_lea.sflag [#allocation6], 1
    %15 = vsyncpa %s14, 0
    %16 = vsyncpa [#allocation9], 0
    %17 = vsyncpa [#allocation4], 0
    %s18 = scalar_lea.sflag [#allocation4], 1
    %19 = vsyncpa %s18, 0
    loop: start=0, step=1, limit=6
    $region2: #{tpu_custom_call.1} parent=1 // loop_pre_header
      _
    $region3: #{tpu_custom_call.1} parent=1 // loop_header
      %s21 = sphi 0, %s25
      %p22 = scmp.ge.s32.totalorder %s21, 6
      %s31 = sphi 0, %s33
      %s34 = sphi 0, %s31
      %s35 = sphi 0, %s34
      %s51 = sphi 0, %s35
      %s57 = sphi 0, %s59
      %s60 = sphi 0, %s57
      %s61 = sphi 0, %s60
      %s77 = sphi 0, %s61
      %s81 = sphi 0, %s81
      %s83 = sphi 0, %s81
      %s84 = sphi 0, %s83
      %s98 = sphi 0, %s84
      %s102 = sphi 0, %s102
      %s104 = sphi 0, %s102
      %s105 = sphi 0, %s104
      %s119 = sphi 0, %s105
      %s123 = sphi 0, %s123
      %s125 = sphi 0, %s123
      %s126 = sphi 0, %s125
      %s140 = sphi 0, %s126
      %s146 = sphi 0, %s148
      %s149 = sphi 0, %s146
      %s150 = sphi 0, %s149
      %s166 = sphi 0, %s150
    $region4: #{tpu_custom_call.1} parent=1 // loop_header_branch
      %24 = sbr.rel (%p22) target = $region8
    $region5: #{tpu_custom_call.1} parent=1 // loop_body
      %s26 = ssub.s32 %s21, 1
      %s27 = ssub.s32 %s21, 2
      %s28 = sadd.s32 %s21, 1
      %s29 = ssub.s32 %s21, %s28
      %p30 = scmp.eq.s32.totalorder %s29, 0
      %s32 = sadd.s32 %s31, 1
      %s33 = scalar_select %p30, %s31, %s32
      %p36 = pneg %p30
      %p37 = scmp.eq.s32.totalorder %s21, 3
      %p38 = por %p36, %p37
      %p39 = scmp.ne.s32.totalorder %s31, %s34
      %p40 = scmp.eq.s32.totalorder %s21, 0
      %p41 = por %p39, %p40
      %p42 = scmp.ne.s32.totalorder %s31, %s34
      %p43 = scmp.eq.s32.totalorder %s26, 3
      %p44 = por %p42, %p43
      %p45 = scmp.ne.s32.totalorder %s34, %s35
      %p46 = scmp.eq.s32.totalorder %s26, 0
      %p47 = por %p45, %p46
      %p48 = scmp.ne.s32.totalorder %s34, %s35
      %p49 = scmp.eq.s32.totalorder %s27, 3
      %p50 = por %p48, %p49
      %p52 = scmp.ne.s32.totalorder %s35, %s51
      %p53 = scmp.eq.s32.totalorder %s27, 0
      %p54 = por %p52, %p53
      %s55 = ssub.s32 %s21, %s28
      %p56 = scmp.eq.s32.totalorder %s55, 0
      %s58 = sadd.s32 %s57, 1
      %s59 = scalar_select %p56, %s57, %s58
      %p62 = pneg %p56
      %p63 = scmp.eq.s32.totalorder %s21, 3
      %p64 = por %p62, %p63
      %p65 = scmp.ne.s32.totalorder %s57, %s60
      %p66 = scmp.eq.s32.totalorder %s21, 0
      %p67 = por %p65, %p66
      %p68 = scmp.ne.s32.totalorder %s57, %s60
      %p69 = scmp.eq.s32.totalorder %s26, 3
      %p70 = por %p68, %p69
      %p71 = scmp.ne.s32.totalorder %s60, %s61
      %p72 = scmp.eq.s32.totalorder %s26, 0
      %p73 = por %p71, %p72
      %p74 = scmp.ne.s32.totalorder %s60, %s61
      %p75 = scmp.eq.s32.totalorder %s27, 3
      %p76 = por %p74, %p75
      %p78 = scmp.ne.s32.totalorder %s61, %s77
      %p79 = scmp.eq.s32.totalorder %s27, 0
      %p80 = por %p78, %p79
      %s82 = sadd.s32 %s81, 1
      %p85 = scmp.eq.s32.totalorder %s21, 3
      %p86 = scmp.ne.s32.totalorder %s81, %s83
      %p87 = scmp.eq.s32.totalorder %s21, 0
      %p88 = por %p86, %p87
      %p89 = scmp.ne.s32.totalorder %s81, %s83
      %p90 = scmp.eq.s32.totalorder %s26, 3
      %p91 = por %p89, %p90
      %p92 = scmp.ne.s32.totalorder %s83, %s84
      %p93 = scmp.eq.s32.totalorder %s26, 0
      %p94 = por %p92, %p93
      %p95 = scmp.ne.s32.totalorder %s83, %s84
      %p96 = scmp.eq.s32.totalorder %s27, 3
      %p97 = por %p95, %p96
      %p99 = scmp.ne.s32.totalorder %s84, %s98
      %p100 = scmp.eq.s32.totalorder %s27, 0
      %p101 = por %p99, %p100
      %s103 = sadd.s32 %s102, 1
      %p106 = scmp.eq.s32.totalorder %s21, 3
      %p107 = scmp.ne.s32.totalorder %s102, %s104
      %p108 = scmp.eq.s32.totalorder %s21, 0
      %p109 = por %p107, %p108
      %p110 = scmp.ne.s32.totalorder %s102, %s104
      %p111 = scmp.eq.s32.totalorder %s26, 3
      %p112 = por %p110, %p111
      %p113 = scmp.ne.s32.totalorder %s104, %s105
      %p114 = scmp.eq.s32.totalorder %s26, 0
      %p115 = por %p113, %p114
      %p116 = scmp.ne.s32.totalorder %s104, %s105
      %p117 = scmp.eq.s32.totalorder %s27, 3
      %p118 = por %p116, %p117
      %p120 = scmp.ne.s32.totalorder %s105, %s119
      %p121 = scmp.eq.s32.totalorder %s27, 0
      %p122 = por %p120, %p121
      %s124 = sadd.s32 %s123, 1
      %p127 = scmp.eq.s32.totalorder %s21, 3
      %p128 = scmp.ne.s32.totalorder %s123, %s125
      %p129 = scmp.eq.s32.totalorder %s21, 0
      %p130 = por %p128, %p129
      %p131 = scmp.ne.s32.totalorder %s123, %s125
      %p132 = scmp.eq.s32.totalorder %s26, 3
      %p133 = por %p131, %p132
      %p134 = scmp.ne.s32.totalorder %s125, %s126
      %p135 = scmp.eq.s32.totalorder %s26, 0
      %p136 = por %p134, %p135
      %p137 = scmp.ne.s32.totalorder %s125, %s126
      %p138 = scmp.eq.s32.totalorder %s27, 3
      %p139 = por %p137, %p138
      %p141 = scmp.ne.s32.totalorder %s126, %s140
      %p142 = scmp.eq.s32.totalorder %s27, 0
      %p143 = por %p141, %p142
      %s144 = ssub.s32 %s21, %s28
      %p145 = scmp.eq.s32.totalorder %s144, 0
      %s147 = sadd.s32 %s146, 1
      %s148 = scalar_select %p145, %s146, %s147
      %p151 = pneg %p145
      %p152 = scmp.eq.s32.totalorder %s21, 3
      %p153 = por %p151, %p152
      %p154 = scmp.ne.s32.totalorder %s146, %s149
      %p155 = scmp.eq.s32.totalorder %s21, 0
      %p156 = por %p154, %p155
      %p157 = scmp.ne.s32.totalorder %s146, %s149
      %p158 = scmp.eq.s32.totalorder %s26, 3
      %p159 = por %p157, %p158
      %p160 = scmp.ne.s32.totalorder %s149, %s150
      %p161 = scmp.eq.s32.totalorder %s26, 0
      %p162 = por %p160, %p161
      %p163 = scmp.ne.s32.totalorder %s149, %s150
      %p164 = scmp.eq.s32.totalorder %s27, 3
      %p165 = por %p163, %p164
      %p167 = scmp.ne.s32.totalorder %s150, %s166
      %p168 = scmp.eq.s32.totalorder %s27, 0
      %p169 = por %p167, %p168
      %p170 = scmp.le.s32.totalorder 1, %s21
      %p171 = scmp.lt.s32.totalorder %s21, 5
      %p172 = pnand %p170, %p171
      %p173 = pneg %p172
      // Predicated region
      $region9: #{tpu_custom_call.1} parent=5 // pred_check
        _
      $region10: #{tpu_custom_call.1} parent=5 // pred_check_branch
        %175 = sbr.rel (%p172) target = $region12
      $region11: #{tpu_custom_call.1} parent=5 // pred_region
        %s176 = ssub.s32 %s21, 1
        // Predicated region
        $region13: #{tpu_custom_call.1} parent=11 // pred_check
          %p177 = pneg %p94
        $region14: #{tpu_custom_call.1} parent=11 // pred_check_branch
          %179 = sbr.rel (%p177) target = $region16
        $region15: #{tpu_custom_call.1} parent=11 // pred_region
          %s181 = ssub.s32 1024, 1024
          %182 = vsyncadd [#allocation6], %s181
          %s183 = sshll.u32 [#allocation7], 4
          %s184 = int_to_ptr.vmem [resolvable:$true] %s183
          %189 = dma.hbm_to_vmem [thread:$0]  %s2, 1024, %s184, [#allocation6], 64, 64, 4
        $region16: #{tpu_custom_call.1} parent=11 // pred_fallthru
          _
        // Predicated region
        $region17: #{tpu_custom_call.1} parent=11 // pred_check
          %p190 = pneg %p115
        $region18: #{tpu_custom_call.1} parent=11 // pred_check_branch
          %192 = sbr.rel (%p190) target = $region20
        $region19: #{tpu_custom_call.1} parent=11 // pred_region
          %s194 = ssub.s32 1024, 1024
          %195 = vsyncadd [#allocation9], %s194
          %s196 = sshll.u32 [#allocation8], 4
          %s197 = int_to_ptr.vmem [resolvable:$true] %s196
          %202 = dma.hbm_to_vmem [thread:$0]  %s3, 1024, %s197, [#allocation9], 64, 64, 4
        $region20: #{tpu_custom_call.1} parent=11 // pred_fallthru
          _
        // Predicated region
        $region21: #{tpu_custom_call.1} parent=11 // pred_check
          %p203 = pneg %p136
        $region22: #{tpu_custom_call.1} parent=11 // pred_check_branch
          %205 = sbr.rel (%p203) target = $region24
        $region23: #{tpu_custom_call.1} parent=11 // pred_region
          _
        $region24: #{tpu_custom_call.1} parent=11 // pred_fallthru
          _
      $region12: #{tpu_custom_call.1} parent=5 // pred_fallthru
        _
      %p206 = scmp.lt.s32.totalorder %s21, 4
      // Predicated region
      $region25: #{tpu_custom_call.1} parent=5 // pred_check
        %p207 = pneg %p206
      $region26: #{tpu_custom_call.1} parent=5 // pred_check_branch
        %209 = sbr.rel (%p207) target = $region28
      $region27: #{tpu_custom_call.1} parent=5 // pred_region
        // Predicated region
        $region29: #{tpu_custom_call.1} parent=27 // pred_check
          %p210 = pneg %p41
        $region30: #{tpu_custom_call.1} parent=27 // pred_check_branch
          %212 = sbr.rel (%p210) target = $region32
        $region31: #{tpu_custom_call.1} parent=27 // pred_region
          %s213 = sand.u32 %s31, 1
          %s214 = scalar_lea.sflag [#allocation3], %s213
          %s215 = sand.u32 %s31, 1
          %s216 = smul.addr %s215, 128
          %s217 = scalar_lea.vmem [#allocation2], %s216
          %s219 = ssub.s32 2048, 2048
          %220 = vsyncadd %s214, %s219
          %s221 = smul.addr %s21, 16
          %s222 = smul.addr %s221, 128
          %s223 = scalar_lea.hbm %s0, %s222
          %s224 = sshll.u32 %s217, 4
          %s225 = int_to_ptr.vmem [resolvable:$true] %s224
          %230 = dma.hbm_to_vmem [thread:$0]  %s223, 2048, %s225, %s214, 128, 128, 8
        $region32: #{tpu_custom_call.1} parent=27 // pred_fallthru
          _
        // Predicated region
        $region33: #{tpu_custom_call.1} parent=27 // pred_check
          %p231 = pneg %p67
        $region34: #{tpu_custom_call.1} parent=27 // pred_check_branch
          %233 = sbr.rel (%p231) target = $region36
        $region35: #{tpu_custom_call.1} parent=27 // pred_region
          %s234 = sand.u32 %s21, 1
          %s235 = scalar_lea.sflag [#allocation6], %s234
          %s236 = sand.u32 %s57, 1
          %s237 = smul.addr %s236, 64
          %s238 = scalar_lea.vmem [#allocation5], %s237
          %s240 = ssub.s32 1024, 1024
          %241 = vsyncadd %s235, %s240
          %s242 = smul.addr %s21, 16
          %s243 = smul.addr %s242, 64
          %s244 = scalar_lea.hbm %s1, %s243
          %s245 = sshll.u32 %s238, 4
          %s246 = int_to_ptr.vmem [resolvable:$true] %s245
          %251 = dma.hbm_to_vmem [thread:$0]  %s244, 1024, %s246, %s235, 64, 64, 4
        $region36: #{tpu_custom_call.1} parent=27 // pred_fallthru
          _
      $region28: #{tpu_custom_call.1} parent=5 // pred_fallthru
        _
      %p252 = scmp.le.s32.totalorder 1, %s21
      %p253 = scmp.lt.s32.totalorder %s21, 5
      %p254 = pnand %p252, %p253
      %p255 = pneg %p254
      // Predicated region
      $region37: #{tpu_custom_call.1} parent=5 // pred_check
        _
      $region38: #{tpu_custom_call.1} parent=5 // pred_check_branch
        %257 = sbr.rel (%p254) target = $region40
      $region39: #{tpu_custom_call.1} parent=5 // pred_region
        %s258 = ssub.s32 %s21, 1
        %s259 = sand.u32 %s34, 1
        %s260 = scalar_lea.sflag [#allocation3], %s259
        %s261 = sand.u32 %s34, 1
        %s262 = smul.addr %s261, 128
        %s263 = scalar_lea.vmem [#allocation2], %s262
        // Predicated region
        $region41: #{tpu_custom_call.1} parent=39 // pred_check
          %p264 = pneg %p47
        $region42: #{tpu_custom_call.1} parent=39 // pred_check_branch
          %266 = sbr.rel (%p264) target = $region44
        $region43: #{tpu_custom_call.1} parent=39 // pred_region
          %267 = dma.done %s260, 2048
        $region44: #{tpu_custom_call.1} parent=39 // pred_fallthru
          _
        %s268 = sand.u32 %s26, 1
        %s269 = scalar_lea.sflag [#allocation6], %s268
        %s270 = sand.u32 %s60, 1
        %s271 = smul.addr %s270, 64
        %s272 = scalar_lea.vmem [#allocation5], %s271
        // Predicated region
        $region45: #{tpu_custom_call.1} parent=39 // pred_check
          %p273 = pneg %p73
        $region46: #{tpu_custom_call.1} parent=39 // pred_check_branch
          %275 = sbr.rel (%p273) target = $region48
        $region47: #{tpu_custom_call.1} parent=39 // pred_region
          %276 = dma.done %s269, 1024
        $region48: #{tpu_custom_call.1} parent=39 // pred_fallthru
          _
        // Predicated region
        $region49: #{tpu_custom_call.1} parent=39 // pred_check
          %p277 = pneg %p94
        $region50: #{tpu_custom_call.1} parent=39 // pred_check_branch
          %279 = sbr.rel (%p277) target = $region52
        $region51: #{tpu_custom_call.1} parent=39 // pred_region
          %280 = dma.done [#allocation6], 1024
        $region52: #{tpu_custom_call.1} parent=39 // pred_fallthru
          _
        // Predicated region
        $region53: #{tpu_custom_call.1} parent=39 // pred_check
          %p281 = pneg %p115
        $region54: #{tpu_custom_call.1} parent=39 // pred_check_branch
          %283 = sbr.rel (%p281) target = $region56
        $region55: #{tpu_custom_call.1} parent=39 // pred_region
          %284 = dma.done [#allocation9], 1024
        $region56: #{tpu_custom_call.1} parent=39 // pred_fallthru
          _
        %s285 = sand.u32 %s34, 1
        %s286 = scalar_lea.sflag [#allocation3], %s285
        %s287 = sand.u32 %s34, 1
        %s288 = smul.addr %s287, 128
        %s289 = scalar_lea.vmem [#allocation2], %s288
        %p290 = pneg %p47
        %p291 = pneg %p44
        %s292 = sand.u32 %s26, 1
        %s293 = scalar_lea.sflag [#allocation6], %s292
        %s294 = sand.u32 %s60, 1
        %s295 = smul.addr %s294, 64
        %s296 = scalar_lea.vmem [#allocation5], %s295
        %p297 = pneg %p73
        %p298 = pneg %p70
        %p299 = pneg %p94
        %p300 = pneg %p91
        %p301 = pneg %p115
        %p302 = pneg %p112
        %p303 = pneg %p136
        %p304 = pneg %p133
        %p305 = pneg %p162
        %p306 = pneg %p159
        %s307 = sand.u32 %s149, 1
        %s308 = scalar_lea.sflag [#allocation4], %s307
        %s309 = sand.u32 %s149, 1
        %s310 = smul.addr %s309, 128
        %s311 = scalar_lea.vmem [#allocation10], %s310
        %v313 = vld [vmem:[%s263] sm:$0xff]
        %v314 = vld [vmem:[%s263 + $0x8] sm:$0xff]
        %v315 = vld [vmem:[%s263 + $0x10] sm:$0xff]
        %v316 = vld [vmem:[%s263 + $0x18] sm:$0xff]
        %v317 = vld [vmem:[%s263 + $0x20] sm:$0xff]
        %v318 = vld [vmem:[%s263 + $0x28] sm:$0xff]
        %v319 = vld [vmem:[%s263 + $0x30] sm:$0xff]
        %v320 = vld [vmem:[%s263 + $0x38] sm:$0xff]
        %v321 = vld [vmem:[%s263 + $0x40] sm:$0xff]
        %v322 = vld [vmem:[%s263 + $0x48] sm:$0xff]
        %v323 = vld [vmem:[%s263 + $0x50] sm:$0xff]
        %v324 = vld [vmem:[%s263 + $0x58] sm:$0xff]
        %v325 = vld [vmem:[%s263 + $0x60] sm:$0xff]
        %v326 = vld [vmem:[%s263 + $0x68] sm:$0xff]
        %v327 = vld [vmem:[%s263 + $0x70] sm:$0xff]
        %v328 = vld [vmem:[%s263 + $0x78] sm:$0xff]
        %v329 = vld [vmem:[%s272] sm:$0xf]
        %v330 = vld [vmem:[%s272 + $0x4] sm:$0xf]
        %v331 = vld [vmem:[%s272 + $0x8] sm:$0xf]
        %v332 = vld [vmem:[%s272 + $0xc] sm:$0xf]
        %v333 = vld [vmem:[%s272 + $0x10] sm:$0xf]
        %v334 = vld [vmem:[%s272 + $0x14] sm:$0xf]
        %v335 = vld [vmem:[%s272 + $0x18] sm:$0xf]
        %v336 = vld [vmem:[%s272 + $0x1c] sm:$0xf]
        %v337 = vld [vmem:[%s272 + $0x20] sm:$0xf]
        %v338 = vld [vmem:[%s272 + $0x24] sm:$0xf]
        %v339 = vld [vmem:[%s272 + $0x28] sm:$0xf]
        %v340 = vld [vmem:[%s272 + $0x2c] sm:$0xf]
        %v341 = vld [vmem:[%s272 + $0x30] sm:$0xf]
        %v342 = vld [vmem:[%s272 + $0x34] sm:$0xf]
        %v343 = vld [vmem:[%s272 + $0x38] sm:$0xf]
        %v344 = vld [vmem:[%s272 + $0x3c] sm:$0xf]
        %v345 = vld [vmem:[#allocation7] sm:$0xf]
        %v346 = vld [vmem:[#allocation7 + $0x4] sm:$0xf]
        %v347 = vld [vmem:[#allocation7 + $0x8] sm:$0xf]
        %v348 = vld [vmem:[#allocation7 + $0xc] sm:$0xf]
        %v349 = vld [vmem:[#allocation7 + $0x10] sm:$0xf]
        %v350 = vld [vmem:[#allocation7 + $0x14] sm:$0xf]
        %v351 = vld [vmem:[#allocation7 + $0x18] sm:$0xf]
        %v352 = vld [vmem:[#allocation7 + $0x1c] sm:$0xf]
        %v353 = vld [vmem:[#allocation7 + $0x20] sm:$0xf]
        %v354 = vld [vmem:[#allocation7 + $0x24] sm:$0xf]
        %v355 = vld [vmem:[#allocation7 + $0x28] sm:$0xf]
        %v356 = vld [vmem:[#allocation7 + $0x2c] sm:$0xf]
        %v357 = vld [vmem:[#allocation7 + $0x30] sm:$0xf]
        %v358 = vld [vmem:[#allocation7 + $0x34] sm:$0xf]
        %v359 = vld [vmem:[#allocation7 + $0x38] sm:$0xf]
        %v360 = vld [vmem:[#allocation7 + $0x3c] sm:$0xf]
        %v361 = vld [vmem:[#allocation8] sm:$0xf]
        %v362 = vld [vmem:[#allocation8 + $0x4] sm:$0xf]
        %v363 = vld [vmem:[#allocation8 + $0x8] sm:$0xf]
        %v364 = vld [vmem:[#allocation8 + $0xc] sm:$0xf]
        %v365 = vld [vmem:[#allocation8 + $0x10] sm:$0xf]
        %v366 = vld [vmem:[#allocation8 + $0x14] sm:$0xf]
        %v367 = vld [vmem:[#allocation8 + $0x18] sm:$0xf]
        %v368 = vld [vmem:[#allocation8 + $0x1c] sm:$0xf]
        %v369 = vld [vmem:[#allocation8 + $0x20] sm:$0xf]
        %v370 = vld [vmem:[#allocation8 + $0x24] sm:$0xf]
        %v371 = vld [vmem:[#allocation8 + $0x28] sm:$0xf]
        %v372 = vld [vmem:[#allocation8 + $0x2c] sm:$0xf]
        %v373 = vld [vmem:[#allocation8 + $0x30] sm:$0xf]
        %v374 = vld [vmem:[#allocation8 + $0x34] sm:$0xf]
        %v375 = vld [vmem:[#allocation8 + $0x38] sm:$0xf]
        %v376 = vld [vmem:[#allocation8 + $0x3c] sm:$0xf]
        %v377 = vld [vmem:[%s4] sm:$0x1]
        %v378 = vld [vmem:[%s4 + $0x1] sm:$0x1]
        %v379 = vld [vmem:[%s4 + $0x2] sm:$0x1]
        %v380 = vld [vmem:[%s4 + $0x3] sm:$0x1]
        %v381 = vld [vmem:[%s4 + $0x4] sm:$0x1]
        %v382 = vld [vmem:[%s4 + $0x5] sm:$0x1]
        %v383 = vld [vmem:[%s4 + $0x6] sm:$0x1]
        %v384 = vld [vmem:[%s4 + $0x7] sm:$0x1]
        %v385 = vadd.f32 %v313, %v314
        %v386 = vadd.f32 %v385, %v315
        %v387 = vadd.f32 %v386, %v316
        %v388 = vadd.f32 %v387, %v317
        %v389 = vadd.f32 %v388, %v318
        %v390 = vadd.f32 %v389, %v319
        %v391 = vadd.f32 %v390, %v320
        %v392 = vadd.f32 %v391, %v321
        %v393 = vadd.f32 %v392, %v322
        %v394 = vadd.f32 %v393, %v323
        %v395 = vadd.f32 %v394, %v324
        %v396 = vadd.f32 %v395, %v325
        %v397 = vadd.f32 %v396, %v326
        %v398 = vadd.f32 %v397, %v327
        %v399 = vadd.f32 %v398, %v328
        %v400 = vrot.slane %v399, 4
        %v401 = vadd.f32 %v399, %v400
        %v402 = vrot.slane %v401, 2
        %v403 = vadd.f32 %v401, %v402
        %v404 = vrot.slane %v403, 1
        %v405 = vadd.f32 %v403, %v404
        %v406 = vmul.f32 %v313, %v313
        %v407 = vmul.f32 %v314, %v314
        %v408 = vmul.f32 %v315, %v315
        %v409 = vmul.f32 %v316, %v316
        %v410 = vmul.f32 %v317, %v317
        %v411 = vmul.f32 %v318, %v318
        %v412 = vmul.f32 %v319, %v319
        %v413 = vmul.f32 %v320, %v320
        %v414 = vmul.f32 %v321, %v321
        %v415 = vmul.f32 %v322, %v322
        %v416 = vmul.f32 %v323, %v323
        %v417 = vmul.f32 %v324, %v324
        %v418 = vmul.f32 %v325, %v325
        %v419 = vmul.f32 %v326, %v326
        %v420 = vmul.f32 %v327, %v327
        %v421 = vmul.f32 %v328, %v328
        %v422 = vadd.f32 %v406, %v407
        %v423 = vadd.f32 %v422, %v408
        %v424 = vadd.f32 %v423, %v409
        %v425 = vadd.f32 %v424, %v410
        %v426 = vadd.f32 %v425, %v411
        %v427 = vadd.f32 %v426, %v412
        %v428 = vadd.f32 %v427, %v413
        %v429 = vadd.f32 %v428, %v414
        %v430 = vadd.f32 %v429, %v415
        %v431 = vadd.f32 %v430, %v416
        %v432 = vadd.f32 %v431, %v417
        %v433 = vadd.f32 %v432, %v418
        %v434 = vadd.f32 %v433, %v419
        %v435 = vadd.f32 %v434, %v420
        %v436 = vadd.f32 %v435, %v421
        %v437 = vrot.slane %v436, 4
        %v438 = vadd.f32 %v436, %v437
        %v439 = vrot.slane %v438, 2
        %v440 = vadd.f32 %v438, %v439
        %v441 = vrot.slane %v440, 1
        %v442 = vadd.f32 %v440, %v441
        %v443 = vmul.f32 %v405, 0.0078125
        %v444 = vmul.f32 %v442, 0.0078125
        %v445 = vmul.f32 %v443, %v443
        %v446 = vsub.f32 %v444, %v445
        %v447 = vmax.f32 %v446, 0.0
        %v448 = vadd.f32 %v447, 1e-05
        %v449 = vrsqrt.pop %v448
        %v450 = vmul.f32 %v377, %v449
        %v451 = vsub.f32 %v313, %v443
        %v452 = vsub.f32 %v314, %v443
        %v453 = vsub.f32 %v315, %v443
        %v454 = vsub.f32 %v316, %v443
        %v455 = vsub.f32 %v317, %v443
        %v456 = vsub.f32 %v318, %v443
        %v457 = vsub.f32 %v319, %v443
        %v458 = vsub.f32 %v320, %v443
        %v459 = vsub.f32 %v321, %v443
        %v460 = vsub.f32 %v322, %v443
        %v461 = vsub.f32 %v323, %v443
        %v462 = vsub.f32 %v324, %v443
        %v463 = vsub.f32 %v325, %v443
        %v464 = vsub.f32 %v326, %v443
        %v465 = vsub.f32 %v327, %v443
        %v466 = vsub.f32 %v328, %v443
        %v467 = vlaneseq
        %v468 = vshrl.u32 %v467, 7
        %v469 = vsub.s32 0, %v468
        %v470 = vrot.slane %v450, %v469
        %v471 = vmul.f32 %v451, %v470
        %v472 = vmul.f32 %v452, %v470
        %v473 = vmul.f32 %v453, %v470
        %v474 = vmul.f32 %v454, %v470
        %v475 = vmul.f32 %v455, %v470
        %v476 = vmul.f32 %v456, %v470
        %v477 = vmul.f32 %v457, %v470
        %v478 = vmul.f32 %v458, %v470
        %v479 = vmul.f32 %v459, %v470
        %v480 = vmul.f32 %v460, %v470
        %v481 = vmul.f32 %v461, %v470
        %v482 = vmul.f32 %v462, %v470
        %v483 = vmul.f32 %v463, %v470
        %v484 = vmul.f32 %v464, %v470
        %v485 = vmul.f32 %v465, %v470
        %v486 = vmul.f32 %v466, %v470
        %v487 = vlaneseq
        %v488 = vshrl.u32 %v487, 7
        %v489 = vsub.s32 0, %v488
        %v490 = vrot.slane %v378, %v489
        %v491 = vadd.f32 %v471, %v490
        %v492 = vadd.f32 %v472, %v490
        %v493 = vadd.f32 %v473, %v490
        %v494 = vadd.f32 %v474, %v490
        %v495 = vadd.f32 %v475, %v490
        %v496 = vadd.f32 %v476, %v490
        %v497 = vadd.f32 %v477, %v490
        %v498 = vadd.f32 %v478, %v490
        %v499 = vadd.f32 %v479, %v490
        %v500 = vadd.f32 %v480, %v490
        %v501 = vadd.f32 %v481, %v490
        %v502 = vadd.f32 %v482, %v490
        %v503 = vadd.f32 %v483, %v490
        %v504 = vadd.f32 %v484, %v490
        %v505 = vadd.f32 %v485, %v490
        %v506 = vadd.f32 %v486, %v490
        %v507 = vpack.c.bf16 %v492, %v491
        %v508 = vpack.c.bf16 %v494, %v493
        %v509 = vpack.c.bf16 %v496, %v495
        %v510 = vpack.c.bf16 %v498, %v497
        %v511 = vpack.c.bf16 %v500, %v499
        %v512 = vpack.c.bf16 %v502, %v501
        %v513 = vpack.c.bf16 %v504, %v503
        %v514 = vpack.c.bf16 %v506, %v505
        %v531 = vunpack.c.l.b16 %v345
        %v532 = vunpack.c.l.b16 %v346
        %v533 = vunpack.c.l.b16 %v347
        %v534 = vunpack.c.l.b16 %v348
        %v535 = vunpack.c.l.b16 %v349
        %v536 = vunpack.c.l.b16 %v350
        %v537 = vunpack.c.l.b16 %v351
        %v538 = vunpack.c.l.b16 %v352
        %v539 = vunpack.c.l.b16 %v353
        %v540 = vunpack.c.l.b16 %v354
        %v541 = vunpack.c.l.b16 %v355
        %v542 = vunpack.c.l.b16 %v356
        %v543 = vunpack.c.l.b16 %v357
        %v544 = vunpack.c.l.b16 %v358
        %v545 = vunpack.c.l.b16 %v359
        %v546 = vunpack.c.l.b16 %v360
        %v547 = vpack.c.b16 %v532, %v531
        %v548 = vpack.c.b16 %v534, %v533
        %v549 = vpack.c.b16 %v536, %v535
        %v550 = vpack.c.b16 %v538, %v537
        %v551 = vpack.c.b16 %v540, %v539
        %v552 = vpack.c.b16 %v542, %v541
        %v553 = vpack.c.b16 %v544, %v543
        %v554 = vpack.c.b16 %v546, %v545
        %563 = vmatprep.subr.bf16.mxu0 0
        %564 = vmatpush1.bf16.msra.mxu0 %v547
        %565 = vmatprep.subr.bf16.mxu0 0
        %566 = vmatpush1.bf16.msra.mxu0 %v548
        %567 = vmatprep.subr.bf16.mxu0 0
        %568 = vmatpush1.bf16.msra.mxu0 %v549
        %569 = vmatprep.subr.bf16.mxu0 0
        %570 = vmatpush1.bf16.msra.mxu0 %v550
        %571 = vmatprep.subr.bf16.mxu0 0
        %572 = vmatpush1.bf16.msra.mxu0 %v551
        %573 = vmatprep.subr.bf16.mxu0 0
        %574 = vmatpush1.bf16.msra.mxu0 %v552
        %575 = vmatprep.subr.bf16.mxu0 0
        %576 = vmatpush1.bf16.msra.mxu0 %v553
        %577 = vmatprep.subr.bf16.mxu0 0
        %578 = vmatpush1.bf16.msra.mxu0 %v554
        %579 = vmatprep.subr.bf16.mxu0 0
        %580 = vmatpush1.bf16.msra.mxu0 0
        %581 = vmatprep.subr.bf16.mxu0 0
        %582 = vmatpush1.bf16.msra.mxu0 0
        %583 = vmatprep.subr.bf16.mxu0 0
        %584 = vmatpush1.bf16.msra.mxu0 0
        %585 = vmatprep.subr.bf16.mxu0 0
        %586 = vmatpush1.bf16.msra.mxu0 0
        %587 = vmatprep.subr.bf16.mxu0 0
        %588 = vmatpush1.bf16.msra.mxu0 0
        %589 = vmatprep.subr.bf16.mxu0 0
        %590 = vmatpush1.bf16.msra.mxu0 0
        %591 = vmatprep.subr.bf16.mxu0 0
        %592 = vmatpush1.bf16.msra.mxu0 0
        %593 = vmatprep.subr.bf16.mxu0 0
        %594 = vmatpush1.bf16.msra.mxu0 0
        %595 = vmatprep.mubr.bf16.mxu0 0
        %596 = vmatmul.mubr.bf16.gmra.mrb[0].mxu0 %v507
        %v597 = vpop.f32.mrb[0].mxu0
        %v598 = vadd.f32 0.0, %v597
        %v599 = vpop.f32.mrb[0].mxu0
        %v600 = vpop.f32.mrb[0].mxu0
        %v601 = vadd.f32 0.0, %v600
        %v602 = vpop.f32.mrb[0].mxu0
        %603 = vmatprep.mubr.bf16.mxu0 0
        %604 = vmatmul.mubr.bf16.gmra.mrb[0].mxu0 %v508
        %v605 = vpop.f32.mrb[0].mxu0
        %v606 = vadd.f32 0.0, %v605
        %v607 = vpop.f32.mrb[0].mxu0
        %v608 = vpop.f32.mrb[0].mxu0
        %v609 = vadd.f32 0.0, %v608
        %v610 = vpop.f32.mrb[0].mxu0
        %611 = vmatprep.mubr.bf16.mxu0 0
        %612 = vmatmul.mubr.bf16.gmra.mrb[0].mxu0 %v509
        %v613 = vpop.f32.mrb[0].mxu0
        %v614 = vadd.f32 0.0, %v613
        %v615 = vpop.f32.mrb[0].mxu0
        %v616 = vpop.f32.mrb[0].mxu0
        %v617 = vadd.f32 0.0, %v616
        %v618 = vpop.f32.mrb[0].mxu0
        %619 = vmatprep.mubr.bf16.mxu0 0
        %620 = vmatmul.mubr.bf16.gmra.mrb[0].mxu0 %v510
        %v621 = vpop.f32.mrb[0].mxu0
        %v622 = vadd.f32 0.0, %v621
        %v623 = vpop.f32.mrb[0].mxu0
        %v624 = vpop.f32.mrb[0].mxu0
        %v625 = vadd.f32 0.0, %v624
        %v626 = vpop.f32.mrb[0].mxu0
        %627 = vmatprep.mubr.bf16.mxu0 0
        %628 = vmatmul.mubr.bf16.gmra.mrb[0].mxu0 %v511
        %v629 = vpop.f32.mrb[0].mxu0
        %v630 = vadd.f32 0.0, %v629
        %v631 = vpop.f32.mrb[0].mxu0
        %v632 = vpop.f32.mrb[0].mxu0
        %v633 = vadd.f32 0.0, %v632
        %v634 = vpop.f32.mrb[0].mxu0
        %635 = vmatprep.mubr.bf16.mxu0 0
        %636 = vmatmul.mubr.bf16.gmra.mrb[0].mxu0 %v512
        %v637 = vpop.f32.mrb[0].mxu0
        %v638 = vadd.f32 0.0, %v637
        %v639 = vpop.f32.mrb[0].mxu0
        %v640 = vpop.f32.mrb[0].mxu0
        %v641 = vadd.f32 0.0, %v640
        %v642 = vpop.f32.mrb[0].mxu0
        %643 = vmatprep.mubr.bf16.mxu0 0
        %644 = vmatmul.mubr.bf16.gmra.mrb[0].mxu0 %v513
        %v645 = vpop.f32.mrb[0].mxu0
        %v646 = vadd.f32 0.0, %v645
        %v647 = vpop.f32.mrb[0].mxu0
        %v648 = vpop.f32.mrb[0].mxu0
        %v649 = vadd.f32 0.0, %v648
        %v650 = vpop.f32.mrb[0].mxu0
        %651 = vmatprep.mubr.bf16.mxu0 0
        %652 = vmatmul.mubr.bf16.gmra.mrb[0].mxu0 %v514
        %v653 = vpop.f32.mrb[0].mxu0
        %v654 = vadd.f32 0.0, %v653
        %v655 = vpop.f32.mrb[0].mxu0
        %v656 = vpop.f32.mrb[0].mxu0
        %v657 = vadd.f32 0.0, %v656
        %v658 = vpop.f32.mrb[0].mxu0
        %659 = vdwg.mxu0
        %v660 = vpack.c.bf16 %v601, %v598
        %v661 = vpack.c.bf16 %v609, %v606
        %v662 = vpack.c.bf16 %v617, %v614
        %v663 = vpack.c.bf16 %v625, %v622
        %v664 = vpack.c.bf16 %v633, %v630
        %v665 = vpack.c.bf16 %v641, %v638
        %v666 = vpack.c.bf16 %v649, %v646
        %v667 = vpack.c.bf16 %v657, %v654
        %v668 = vlaneseq
        %v669 = vshrl.u32 %v668, 7
        %v670 = vsub.s32 0, %v669
        %v671 = vrot.slane %v379, %v670
        %v688 = vunpack.c.l.b16 %v329
        %v689 = vunpack.c.l.b16 %v330
        %v690 = vunpack.c.l.b16 %v331
        %v691 = vunpack.c.l.b16 %v332
        %v692 = vunpack.c.l.b16 %v333
        %v693 = vunpack.c.l.b16 %v334
        %v694 = vunpack.c.l.b16 %v335
        %v695 = vunpack.c.l.b16 %v336
        %v696 = vunpack.c.l.b16 %v337
        %v697 = vunpack.c.l.b16 %v338
        %v698 = vunpack.c.l.b16 %v339
        %v699 = vunpack.c.l.b16 %v340
        %v700 = vunpack.c.l.b16 %v341
        %v701 = vunpack.c.l.b16 %v342
        %v702 = vunpack.c.l.b16 %v343
        %v703 = vunpack.c.l.b16 %v344
        %v704 = vpack.c.b16 %v689, %v688
        %v705 = vpack.c.b16 %v691, %v690
        %v706 = vpack.c.b16 %v693, %v692
        %v707 = vpack.c.b16 %v695, %v694
        %v708 = vpack.c.b16 %v697, %v696
        %v709 = vpack.c.b16 %v699, %v698
        %v710 = vpack.c.b16 %v701, %v700
        %v711 = vpack.c.b16 %v703, %v702
        %720 = vmatprep.subr.bf16.mxu0 0
        %721 = vmatpush1.bf16.msra.mxu0 %v660
        %722 = vmatprep.subr.bf16.mxu0 0
        %723 = vmatpush1.bf16.msra.mxu0 %v661
        %724 = vmatprep.subr.bf16.mxu0 0
        %725 = vmatpush1.bf16.msra.mxu0 %v662
        %726 = vmatprep.subr.bf16.mxu0 0
        %727 = vmatpush1.bf16.msra.mxu0 %v663
        %728 = vmatprep.subr.bf16.mxu0 0
        %729 = vmatpush1.bf16.msra.mxu0 %v664
        %730 = vmatprep.subr.bf16.mxu0 0
        %731 = vmatpush1.bf16.msra.mxu0 %v665
        %732 = vmatprep.subr.bf16.mxu0 0
        %733 = vmatpush1.bf16.msra.mxu0 %v666
        %734 = vmatprep.subr.bf16.mxu0 0
        %735 = vmatpush1.bf16.msra.mxu0 %v667
        %736 = vmatprep.subr.bf16.mxu0 0
        %737 = vmatpush1.bf16.msra.mxu0 0
        %738 = vmatprep.subr.bf16.mxu0 0
        %739 = vmatpush1.bf16.msra.mxu0 0
        %740 = vmatprep.subr.bf16.mxu0 0
        %741 = vmatpush1.bf16.msra.mxu0 0
        %742 = vmatprep.subr.bf16.mxu0 0
        %743 = vmatpush1.bf16.msra.mxu0 0
        %744 = vmatprep.subr.bf16.mxu0 0
        %745 = vmatpush1.bf16.msra.mxu0 0
        %746 = vmatprep.subr.bf16.mxu0 0
        %747 = vmatpush1.bf16.msra.mxu0 0
        %748 = vmatprep.subr.bf16.mxu0 0
        %749 = vmatpush1.bf16.msra.mxu0 0
        %750 = vmatprep.subr.bf16.mxu0 0
        %751 = vmatpush1.bf16.msra.mxu0 0
        %752 = vmatprep.mubr.bf16.mxu0 0
        %753 = vmatmul.mubr.bf16.gmra.mrb[0].mxu0 %v704
        %v754 = vpop.f32.mrb[0].mxu0
        %v755 = vadd.f32 %v671, %v754
        %v756 = vpop.f32.mrb[0].mxu0
        %v757 = vpop.f32.mrb[0].mxu0
        %v758 = vadd.f32 %v671, %v757
        %v759 = vpop.f32.mrb[0].mxu0
        %760 = vmatprep.mubr.bf16.mxu0 0
        %761 = vmatmul.mubr.bf16.gmra.mrb[0].mxu0 %v705
        %v762 = vpop.f32.mrb[0].mxu0
        %v763 = vadd.f32 %v671, %v762
        %v764 = vpop.f32.mrb[0].mxu0
        %v765 = vpop.f32.mrb[0].mxu0
        %v766 = vadd.f32 %v671, %v765
        %v767 = vpop.f32.mrb[0].mxu0
        %768 = vmatprep.mubr.bf16.mxu0 0
        %769 = vmatmul.mubr.bf16.gmra.mrb[0].mxu0 %v706
        %v770 = vpop.f32.mrb[0].mxu0
        %v771 = vadd.f32 %v671, %v770
        %v772 = vpop.f32.mrb[0].mxu0
        %v773 = vpop.f32.mrb[0].mxu0
        %v774 = vadd.f32 %v671, %v773
        %v775 = vpop.f32.mrb[0].mxu0
        %776 = vmatprep.mubr.bf16.mxu0 0
        %777 = vmatmul.mubr.bf16.gmra.mrb[0].mxu0 %v707
        %v778 = vpop.f32.mrb[0].mxu0
        %v779 = vadd.f32 %v671, %v778
        %v780 = vpop.f32.mrb[0].mxu0
        %v781 = vpop.f32.mrb[0].mxu0
        %v782 = vadd.f32 %v671, %v781
        %v783 = vpop.f32.mrb[0].mxu0
        %784 = vmatprep.mubr.bf16.mxu0 0
        %785 = vmatmul.mubr.bf16.gmra.mrb[0].mxu0 %v708
        %v786 = vpop.f32.mrb[0].mxu0
        %v787 = vadd.f32 %v671, %v786
        %v788 = vpop.f32.mrb[0].mxu0
        %v789 = vpop.f32.mrb[0].mxu0
        %v790 = vadd.f32 %v671, %v789
        %v791 = vpop.f32.mrb[0].mxu0
        %792 = vmatprep.mubr.bf16.mxu0 0
        %793 = vmatmul.mubr.bf16.gmra.mrb[0].mxu0 %v709
        %v794 = vpop.f32.mrb[0].mxu0
        %v795 = vadd.f32 %v671, %v794
        %v796 = vpop.f32.mrb[0].mxu0
        %v797 = vpop.f32.mrb[0].mxu0
        %v798 = vadd.f32 %v671, %v797
        %v799 = vpop.f32.mrb[0].mxu0
        %800 = vmatprep.mubr.bf16.mxu0 0
        %801 = vmatmul.mubr.bf16.gmra.mrb[0].mxu0 %v710
        %v802 = vpop.f32.mrb[0].mxu0
        %v803 = vadd.f32 %v671, %v802
        %v804 = vpop.f32.mrb[0].mxu0
        %v805 = vpop.f32.mrb[0].mxu0
        %v806 = vadd.f32 %v671, %v805
        %v807 = vpop.f32.mrb[0].mxu0
        %808 = vmatprep.mubr.bf16.mxu0 0
        %809 = vmatmul.mubr.bf16.gmra.mrb[0].mxu0 %v711
        %v810 = vpop.f32.mrb[0].mxu0
        %v811 = vadd.f32 %v671, %v810
        %v812 = vpop.f32.mrb[0].mxu0
        %v813 = vpop.f32.mrb[0].mxu0
        %v814 = vadd.f32 %v671, %v813
        %v815 = vpop.f32.mrb[0].mxu0
        %816 = vdwg.mxu0
        %v817 = vmax.f32 %v755, 0.0
        %v818 = vmax.f32 %v758, 0.0
        %v819 = vmax.f32 %v763, 0.0
        %v820 = vmax.f32 %v766, 0.0
        %v821 = vmax.f32 %v771, 0.0
        %v822 = vmax.f32 %v774, 0.0
        %v823 = vmax.f32 %v779, 0.0
        %v824 = vmax.f32 %v782, 0.0
        %v825 = vmax.f32 %v787, 0.0
        %v826 = vmax.f32 %v790, 0.0
        %v827 = vmax.f32 %v795, 0.0
        %v828 = vmax.f32 %v798, 0.0
        %v829 = vmax.f32 %v803, 0.0
        %v830 = vmax.f32 %v806, 0.0
        %v831 = vmax.f32 %v811, 0.0
        %v832 = vmax.f32 %v814, 0.0
        %v833 = vadd.f32 %v817, %v818
        %v834 = vadd.f32 %v833, %v819
        %v835 = vadd.f32 %v834, %v820
        %v836 = vadd.f32 %v835, %v821
        %v837 = vadd.f32 %v836, %v822
        %v838 = vadd.f32 %v837, %v823
        %v839 = vadd.f32 %v838, %v824
        %v840 = vadd.f32 %v839, %v825
        %v841 = vadd.f32 %v840, %v826
        %v842 = vadd.f32 %v841, %v827
        %v843 = vadd.f32 %v842, %v828
        %v844 = vadd.f32 %v843, %v829
        %v845 = vadd.f32 %v844, %v830
        %v846 = vadd.f32 %v845, %v831
        %v847 = vadd.f32 %v846, %v832
        %v848 = vrot.slane %v847, 4
        %v849 = vadd.f32 %v847, %v848
        %v850 = vrot.slane %v849, 2
        %v851 = vadd.f32 %v849, %v850
        %v852 = vrot.slane %v851, 1
        %v853 = vadd.f32 %v851, %v852
        %v854 = vmul.f32 %v817, %v817
        %v855 = vmul.f32 %v818, %v818
        %v856 = vmul.f32 %v819, %v819
        %v857 = vmul.f32 %v820, %v820
        %v858 = vmul.f32 %v821, %v821
        %v859 = vmul.f32 %v822, %v822
        %v860 = vmul.f32 %v823, %v823
        %v861 = vmul.f32 %v824, %v824
        %v862 = vmul.f32 %v825, %v825
        %v863 = vmul.f32 %v826, %v826
        %v864 = vmul.f32 %v827, %v827
        %v865 = vmul.f32 %v828, %v828
        %v866 = vmul.f32 %v829, %v829
        %v867 = vmul.f32 %v830, %v830
        %v868 = vmul.f32 %v831, %v831
        %v869 = vmul.f32 %v832, %v832
        %v870 = vadd.f32 %v854, %v855
        %v871 = vadd.f32 %v870, %v856
        %v872 = vadd.f32 %v871, %v857
        %v873 = vadd.f32 %v872, %v858
        %v874 = vadd.f32 %v873, %v859
        %v875 = vadd.f32 %v874, %v860
        %v876 = vadd.f32 %v875, %v861
        %v877 = vadd.f32 %v876, %v862
        %v878 = vadd.f32 %v877, %v863
        %v879 = vadd.f32 %v878, %v864
        %v880 = vadd.f32 %v879, %v865
        %v881 = vadd.f32 %v880, %v866
        %v882 = vadd.f32 %v881, %v867
        %v883 = vadd.f32 %v882, %v868
        %v884 = vadd.f32 %v883, %v869
        %v885 = vrot.slane %v884, 4
        %v886 = vadd.f32 %v884, %v885
        %v887 = vrot.slane %v886, 2
        %v888 = vadd.f32 %v886, %v887
        %v889 = vrot.slane %v888, 1
        %v890 = vadd.f32 %v888, %v889
        %v891 = vmul.f32 %v853, 0.0078125
        %v892 = vmul.f32 %v890, 0.0078125
        %v893 = vmul.f32 %v891, %v891
        %v894 = vsub.f32 %v892, %v893
        %v895 = vmax.f32 %v894, 0.0
        %v896 = vadd.f32 %v895, 1e-05
        %v897 = vrsqrt.pop %v896
        %v898 = vmul.f32 %v380, %v897
        %v899 = vsub.f32 %v817, %v891
        %v900 = vsub.f32 %v818, %v891
        %v901 = vsub.f32 %v819, %v891
        %v902 = vsub.f32 %v820, %v891
        %v903 = vsub.f32 %v821, %v891
        %v904 = vsub.f32 %v822, %v891
        %v905 = vsub.f32 %v823, %v891
        %v906 = vsub.f32 %v824, %v891
        %v907 = vsub.f32 %v825, %v891
        %v908 = vsub.f32 %v826, %v891
        %v909 = vsub.f32 %v827, %v891
        %v910 = vsub.f32 %v828, %v891
        %v911 = vsub.f32 %v829, %v891
        %v912 = vsub.f32 %v830, %v891
        %v913 = vsub.f32 %v831, %v891
        %v914 = vsub.f32 %v832, %v891
        %v915 = vlaneseq
        %v916 = vshrl.u32 %v915, 7
        %v917 = vsub.s32 0, %v916
        %v918 = vrot.slane %v898, %v917
        %v919 = vmul.f32 %v899, %v918
        %v920 = vmul.f32 %v900, %v918
        %v921 = vmul.f32 %v901, %v918
        %v922 = vmul.f32 %v902, %v918
        %v923 = vmul.f32 %v903, %v918
        %v924 = vmul.f32 %v904, %v918
        %v925 = vmul.f32 %v905, %v918
        %v926 = vmul.f32 %v906, %v918
        %v927 = vmul.f32 %v907, %v918
        %v928 = vmul.f32 %v908, %v918
        %v929 = vmul.f32 %v909, %v918
        %v930 = vmul.f32 %v910, %v918
        %v931 = vmul.f32 %v911, %v918
        %v932 = vmul.f32 %v912, %v918
        %v933 = vmul.f32 %v913, %v918
        %v934 = vmul.f32 %v914, %v918
        %v935 = vlaneseq
        %v936 = vshrl.u32 %v935, 7
        %v937 = vsub.s32 0, %v936
        %v938 = vrot.slane %v381, %v937
        %v939 = vadd.f32 %v919, %v938
        %v940 = vadd.f32 %v920, %v938
        %v941 = vadd.f32 %v921, %v938
        %v942 = vadd.f32 %v922, %v938
        %v943 = vadd.f32 %v923, %v938
        %v944 = vadd.f32 %v924, %v938
        %v945 = vadd.f32 %v925, %v938
        %v946 = vadd.f32 %v926, %v938
        %v947 = vadd.f32 %v927, %v938
        %v948 = vadd.f32 %v928, %v938
        %v949 = vadd.f32 %v929, %v938
        %v950 = vadd.f32 %v930, %v938
        %v951 = vadd.f32 %v931, %v938
        %v952 = vadd.f32 %v932, %v938
        %v953 = vadd.f32 %v933, %v938
        %v954 = vadd.f32 %v934, %v938
        %v955 = vpack.c.bf16 %v940, %v939
        %v956 = vpack.c.bf16 %v942, %v941
        %v957 = vpack.c.bf16 %v944, %v943
        %v958 = vpack.c.bf16 %v946, %v945
        %v959 = vpack.c.bf16 %v948, %v947
        %v960 = vpack.c.bf16 %v950, %v949
        %v961 = vpack.c.bf16 %v952, %v951
        %v962 = vpack.c.bf16 %v954, %v953
        %v979 = vunpack.c.l.b16 %v361
        %v980 = vunpack.c.l.b16 %v362
        %v981 = vunpack.c.l.b16 %v363
        %v982 = vunpack.c.l.b16 %v364
        %v983 = vunpack.c.l.b16 %v365
        %v984 = vunpack.c.l.b16 %v366
        %v985 = vunpack.c.l.b16 %v367
        %v986 = vunpack.c.l.b16 %v368
        %v987 = vunpack.c.l.b16 %v369
        %v988 = vunpack.c.l.b16 %v370
        %v989 = vunpack.c.l.b16 %v371
        %v990 = vunpack.c.l.b16 %v372
        %v991 = vunpack.c.l.b16 %v373
        %v992 = vunpack.c.l.b16 %v374
        %v993 = vunpack.c.l.b16 %v375
        %v994 = vunpack.c.l.b16 %v376
        %v995 = vpack.c.b16 %v980, %v979
        %v996 = vpack.c.b16 %v982, %v981
        %v997 = vpack.c.b16 %v984, %v983
        %v998 = vpack.c.b16 %v986, %v985
        %v999 = vpack.c.b16 %v988, %v987
        %v1000 = vpack.c.b16 %v990, %v989
        %v1001 = vpack.c.b16 %v992, %v991
        %v1002 = vpack.c.b16 %v994, %v993
        %1011 = vmatprep.subr.bf16.mxu0 0
        %1012 = vmatpush1.bf16.msra.mxu0 %v995
        %1013 = vmatprep.subr.bf16.mxu0 0
        %1014 = vmatpush1.bf16.msra.mxu0 %v996
        %1015 = vmatprep.subr.bf16.mxu0 0
        %1016 = vmatpush1.bf16.msra.mxu0 %v997
        %1017 = vmatprep.subr.bf16.mxu0 0
        %1018 = vmatpush1.bf16.msra.mxu0 %v998
        %1019 = vmatprep.subr.bf16.mxu0 0
        %1020 = vmatpush1.bf16.msra.mxu0 %v999
        %1021 = vmatprep.subr.bf16.mxu0 0
        %1022 = vmatpush1.bf16.msra.mxu0 %v1000
        %1023 = vmatprep.subr.bf16.mxu0 0
        %1024 = vmatpush1.bf16.msra.mxu0 %v1001
        %1025 = vmatprep.subr.bf16.mxu0 0
        %1026 = vmatpush1.bf16.msra.mxu0 %v1002
        %1027 = vmatprep.subr.bf16.mxu0 0
        %1028 = vmatpush1.bf16.msra.mxu0 0
        %1029 = vmatprep.subr.bf16.mxu0 0
        %1030 = vmatpush1.bf16.msra.mxu0 0
        %1031 = vmatprep.subr.bf16.mxu0 0
        %1032 = vmatpush1.bf16.msra.mxu0 0
        %1033 = vmatprep.subr.bf16.mxu0 0
        %1034 = vmatpush1.bf16.msra.mxu0 0
        %1035 = vmatprep.subr.bf16.mxu0 0
        %1036 = vmatpush1.bf16.msra.mxu0 0
        %1037 = vmatprep.subr.bf16.mxu0 0
        %1038 = vmatpush1.bf16.msra.mxu0 0
        %1039 = vmatprep.subr.bf16.mxu0 0
        %1040 = vmatpush1.bf16.msra.mxu0 0
        %1041 = vmatprep.subr.bf16.mxu0 0
        %1042 = vmatpush1.bf16.msra.mxu0 0
        %1043 = vmatprep.mubr.bf16.mxu0 0
        %1044 = vmatmul.mubr.bf16.gmra.mrb[0].mxu0 %v955
        %v1045 = vpop.f32.mrb[0].mxu0
        %v1046 = vadd.f32 0.0, %v1045
        %v1047 = vpop.f32.mrb[0].mxu0
        %v1048 = vpop.f32.mrb[0].mxu0
        %v1049 = vadd.f32 0.0, %v1048
        %v1050 = vpop.f32.mrb[0].mxu0
        %1051 = vmatprep.mubr.bf16.mxu0 0
        %1052 = vmatmul.mubr.bf16.gmra.mrb[0].mxu0 %v956
        %v1053 = vpop.f32.mrb[0].mxu0
        %v1054 = vadd.f32 0.0, %v1053
        %v1055 = vpop.f32.mrb[0].mxu0
        %v1056 = vpop.f32.mrb[0].mxu0
        %v1057 = vadd.f32 0.0, %v1056
        %v1058 = vpop.f32.mrb[0].mxu0
        %1059 = vmatprep.mubr.bf16.mxu0 0
        %1060 = vmatmul.mubr.bf16.gmra.mrb[0].mxu0 %v957
        %v1061 = vpop.f32.mrb[0].mxu0
        %v1062 = vadd.f32 0.0, %v1061
        %v1063 = vpop.f32.mrb[0].mxu0
        %v1064 = vpop.f32.mrb[0].mxu0
        %v1065 = vadd.f32 0.0, %v1064
        %v1066 = vpop.f32.mrb[0].mxu0
        %1067 = vmatprep.mubr.bf16.mxu0 0
        %1068 = vmatmul.mubr.bf16.gmra.mrb[0].mxu0 %v958
        %v1069 = vpop.f32.mrb[0].mxu0
        %v1070 = vadd.f32 0.0, %v1069
        %v1071 = vpop.f32.mrb[0].mxu0
        %v1072 = vpop.f32.mrb[0].mxu0
        %v1073 = vadd.f32 0.0, %v1072
        %v1074 = vpop.f32.mrb[0].mxu0
        %1075 = vmatprep.mubr.bf16.mxu0 0
        %1076 = vmatmul.mubr.bf16.gmra.mrb[0].mxu0 %v959
        %v1077 = vpop.f32.mrb[0].mxu0
        %v1078 = vadd.f32 0.0, %v1077
        %v1079 = vpop.f32.mrb[0].mxu0
        %v1080 = vpop.f32.mrb[0].mxu0
        %v1081 = vadd.f32 0.0, %v1080
        %v1082 = vpop.f32.mrb[0].mxu0
        %1083 = vmatprep.mubr.bf16.mxu0 0
        %1084 = vmatmul.mubr.bf16.gmra.mrb[0].mxu0 %v960
        %v1085 = vpop.f32.mrb[0].mxu0
        %v1086 = vadd.f32 0.0, %v1085
        %v1087 = vpop.f32.mrb[0].mxu0
        %v1088 = vpop.f32.mrb[0].mxu0
        %v1089 = vadd.f32 0.0, %v1088
        %v1090 = vpop.f32.mrb[0].mxu0
        %1091 = vmatprep.mubr.bf16.mxu0 0
        %1092 = vmatmul.mubr.bf16.gmra.mrb[0].mxu0 %v961
        %v1093 = vpop.f32.mrb[0].mxu0
        %v1094 = vadd.f32 0.0, %v1093
        %v1095 = vpop.f32.mrb[0].mxu0
        %v1096 = vpop.f32.mrb[0].mxu0
        %v1097 = vadd.f32 0.0, %v1096
        %v1098 = vpop.f32.mrb[0].mxu0
        %1099 = vmatprep.mubr.bf16.mxu0 0
        %1100 = vmatmul.mubr.bf16.gmra.mrb[0].mxu0 %v962
        %v1101 = vpop.f32.mrb[0].mxu0
        %v1102 = vadd.f32 0.0, %v1101
        %v1103 = vpop.f32.mrb[0].mxu0
        %v1104 = vpop.f32.mrb[0].mxu0
        %v1105 = vadd.f32 0.0, %v1104
        %v1106 = vpop.f32.mrb[0].mxu0
        %1107 = vdwg.mxu0
        %v1108 = vpack.c.bf16 %v1049, %v1046
        %v1109 = vpack.c.bf16 %v1057, %v1054
        %v1110 = vpack.c.bf16 %v1065, %v1062
        %v1111 = vpack.c.bf16 %v1073, %v1070
        %v1112 = vpack.c.bf16 %v1081, %v1078
        %v1113 = vpack.c.bf16 %v1089, %v1086
        %v1114 = vpack.c.bf16 %v1097, %v1094
        %v1115 = vpack.c.bf16 %v1105, %v1102
        %v1116 = vlaneseq
        %v1117 = vshrl.u32 %v1116, 7
        %v1118 = vsub.s32 0, %v1117
        %v1119 = vrot.slane %v382, %v1118
        %1120 = vmatprep.subr.bf16.mxu0 0
        %1121 = vmatpush1.bf16.msra.mxu0 %v1108
        %1122 = vmatprep.subr.bf16.mxu0 0
        %1123 = vmatpush1.bf16.msra.mxu0 %v1109
        %1124 = vmatprep.subr.bf16.mxu0 0
        %1125 = vmatpush1.bf16.msra.mxu0 %v1110
        %1126 = vmatprep.subr.bf16.mxu0 0
        %1127 = vmatpush1.bf16.msra.mxu0 %v1111
        %1128 = vmatprep.subr.bf16.mxu0 0
        %1129 = vmatpush1.bf16.msra.mxu0 %v1112
        %1130 = vmatprep.subr.bf16.mxu0 0
        %1131 = vmatpush1.bf16.msra.mxu0 %v1113
        %1132 = vmatprep.subr.bf16.mxu0 0
        %1133 = vmatpush1.bf16.msra.mxu0 %v1114
        %1134 = vmatprep.subr.bf16.mxu0 0
        %1135 = vmatpush1.bf16.msra.mxu0 %v1115
        %1136 = vmatprep.subr.bf16.mxu0 0
        %1137 = vmatpush1.bf16.msra.mxu0 0
        %1138 = vmatprep.subr.bf16.mxu0 0
        %1139 = vmatpush1.bf16.msra.mxu0 0
        %1140 = vmatprep.subr.bf16.mxu0 0
        %1141 = vmatpush1.bf16.msra.mxu0 0
        %1142 = vmatprep.subr.bf16.mxu0 0
        %1143 = vmatpush1.bf16.msra.mxu0 0
        %1144 = vmatprep.subr.bf16.mxu0 0
        %1145 = vmatpush1.bf16.msra.mxu0 0
        %1146 = vmatprep.subr.bf16.mxu0 0
        %1147 = vmatpush1.bf16.msra.mxu0 0
        %1148 = vmatprep.subr.bf16.mxu0 0
        %1149 = vmatpush1.bf16.msra.mxu0 0
        %1150 = vmatprep.subr.bf16.mxu0 0
        %1151 = vmatpush1.bf16.msra.mxu0 0
        %1152 = vmatprep.mubr.bf16.mxu0 0
        %1153 = vmatmul.mubr.bf16.gmra.mrb[0].mxu0 %v704
        %v1154 = vpop.f32.mrb[0].mxu0
        %v1155 = vadd.f32 %v1119, %v1154
        %v1156 = vpop.f32.mrb[0].mxu0
        %v1157 = vpop.f32.mrb[0].mxu0
        %v1158 = vadd.f32 %v1119, %v1157
        %v1159 = vpop.f32.mrb[0].mxu0
        %1160 = vmatprep.mubr.bf16.mxu0 0
        %1161 = vmatmul.mubr.bf16.gmra.mrb[0].mxu0 %v705
        %v1162 = vpop.f32.mrb[0].mxu0
        %v1163 = vadd.f32 %v1119, %v1162
        %v1164 = vpop.f32.mrb[0].mxu0
        %v1165 = vpop.f32.mrb[0].mxu0
        %v1166 = vadd.f32 %v1119, %v1165
        %v1167 = vpop.f32.mrb[0].mxu0
        %1168 = vmatprep.mubr.bf16.mxu0 0
        %1169 = vmatmul.mubr.bf16.gmra.mrb[0].mxu0 %v706
        %v1170 = vpop.f32.mrb[0].mxu0
        %v1171 = vadd.f32 %v1119, %v1170
        %v1172 = vpop.f32.mrb[0].mxu0
        %v1173 = vpop.f32.mrb[0].mxu0
        %v1174 = vadd.f32 %v1119, %v1173
        %v1175 = vpop.f32.mrb[0].mxu0
        %1176 = vmatprep.mubr.bf16.mxu0 0
        %1177 = vmatmul.mubr.bf16.gmra.mrb[0].mxu0 %v707
        %v1178 = vpop.f32.mrb[0].mxu0
        %v1179 = vadd.f32 %v1119, %v1178
        %v1180 = vpop.f32.mrb[0].mxu0
        %v1181 = vpop.f32.mrb[0].mxu0
        %v1182 = vadd.f32 %v1119, %v1181
        %v1183 = vpop.f32.mrb[0].mxu0
        %1184 = vmatprep.mubr.bf16.mxu0 0
        %1185 = vmatmul.mubr.bf16.gmra.mrb[0].mxu0 %v708
        %v1186 = vpop.f32.mrb[0].mxu0
        %v1187 = vadd.f32 %v1119, %v1186
        %v1188 = vpop.f32.mrb[0].mxu0
        %v1189 = vpop.f32.mrb[0].mxu0
        %v1190 = vadd.f32 %v1119, %v1189
        %v1191 = vpop.f32.mrb[0].mxu0
        %1192 = vmatprep.mubr.bf16.mxu0 0
        %1193 = vmatmul.mubr.bf16.gmra.mrb[0].mxu0 %v709
        %v1194 = vpop.f32.mrb[0].mxu0
        %v1195 = vadd.f32 %v1119, %v1194
        %v1196 = vpop.f32.mrb[0].mxu0
        %v1197 = vpop.f32.mrb[0].mxu0
        %v1198 = vadd.f32 %v1119, %v1197
        %v1199 = vpop.f32.mrb[0].mxu0
        %1200 = vmatprep.mubr.bf16.mxu0 0
        %1201 = vmatmul.mubr.bf16.gmra.mrb[0].mxu0 %v710
        %v1202 = vpop.f32.mrb[0].mxu0
        %v1203 = vadd.f32 %v1119, %v1202
        %v1204 = vpop.f32.mrb[0].mxu0
        %v1205 = vpop.f32.mrb[0].mxu0
        %v1206 = vadd.f32 %v1119, %v1205
        %v1207 = vpop.f32.mrb[0].mxu0
        %1208 = vmatprep.mubr.bf16.mxu0 0
        %1209 = vmatmul.mubr.bf16.gmra.mrb[0].mxu0 %v711
        %v1210 = vpop.f32.mrb[0].mxu0
        %v1211 = vadd.f32 %v1119, %v1210
        %v1212 = vpop.f32.mrb[0].mxu0
        %v1213 = vpop.f32.mrb[0].mxu0
        %v1214 = vadd.f32 %v1119, %v1213
        %v1215 = vpop.f32.mrb[0].mxu0
        %1216 = vdwg.mxu0
        %v1217 = vmax.f32 %v1155, 0.0
        %v1218 = vmax.f32 %v1158, 0.0
        %v1219 = vmax.f32 %v1163, 0.0
        %v1220 = vmax.f32 %v1166, 0.0
        %v1221 = vmax.f32 %v1171, 0.0
        %v1222 = vmax.f32 %v1174, 0.0
        %v1223 = vmax.f32 %v1179, 0.0
        %v1224 = vmax.f32 %v1182, 0.0
        %v1225 = vmax.f32 %v1187, 0.0
        %v1226 = vmax.f32 %v1190, 0.0
        %v1227 = vmax.f32 %v1195, 0.0
        %v1228 = vmax.f32 %v1198, 0.0
        %v1229 = vmax.f32 %v1203, 0.0
        %v1230 = vmax.f32 %v1206, 0.0
        %v1231 = vmax.f32 %v1211, 0.0
        %v1232 = vmax.f32 %v1214, 0.0
        %v1233 = vadd.f32 %v1217, %v1218
        %v1234 = vadd.f32 %v1233, %v1219
        %v1235 = vadd.f32 %v1234, %v1220
        %v1236 = vadd.f32 %v1235, %v1221
        %v1237 = vadd.f32 %v1236, %v1222
        %v1238 = vadd.f32 %v1237, %v1223
        %v1239 = vadd.f32 %v1238, %v1224
        %v1240 = vadd.f32 %v1239, %v1225
        %v1241 = vadd.f32 %v1240, %v1226
        %v1242 = vadd.f32 %v1241, %v1227
        %v1243 = vadd.f32 %v1242, %v1228
        %v1244 = vadd.f32 %v1243, %v1229
        %v1245 = vadd.f32 %v1244, %v1230
        %v1246 = vadd.f32 %v1245, %v1231
        %v1247 = vadd.f32 %v1246, %v1232
        %v1248 = vrot.slane %v1247, 4
        %v1249 = vadd.f32 %v1247, %v1248
        %v1250 = vrot.slane %v1249, 2
        %v1251 = vadd.f32 %v1249, %v1250
        %v1252 = vrot.slane %v1251, 1
        %v1253 = vadd.f32 %v1251, %v1252
        %v1254 = vmul.f32 %v1217, %v1217
        %v1255 = vmul.f32 %v1218, %v1218
        %v1256 = vmul.f32 %v1219, %v1219
        %v1257 = vmul.f32 %v1220, %v1220
        %v1258 = vmul.f32 %v1221, %v1221
        %v1259 = vmul.f32 %v1222, %v1222
        %v1260 = vmul.f32 %v1223, %v1223
        %v1261 = vmul.f32 %v1224, %v1224
        %v1262 = vmul.f32 %v1225, %v1225
        %v1263 = vmul.f32 %v1226, %v1226
        %v1264 = vmul.f32 %v1227, %v1227
        %v1265 = vmul.f32 %v1228, %v1228
        %v1266 = vmul.f32 %v1229, %v1229
        %v1267 = vmul.f32 %v1230, %v1230
        %v1268 = vmul.f32 %v1231, %v1231
        %v1269 = vmul.f32 %v1232, %v1232
        %v1270 = vadd.f32 %v1254, %v1255
        %v1271 = vadd.f32 %v1270, %v1256
        %v1272 = vadd.f32 %v1271, %v1257
        %v1273 = vadd.f32 %v1272, %v1258
        %v1274 = vadd.f32 %v1273, %v1259
        %v1275 = vadd.f32 %v1274, %v1260
        %v1276 = vadd.f32 %v1275, %v1261
        %v1277 = vadd.f32 %v1276, %v1262
        %v1278 = vadd.f32 %v1277, %v1263
        %v1279 = vadd.f32 %v1278, %v1264
        %v1280 = vadd.f32 %v1279, %v1265
        %v1281 = vadd.f32 %v1280, %v1266
        %v1282 = vadd.f32 %v1281, %v1267
        %v1283 = vadd.f32 %v1282, %v1268
        %v1284 = vadd.f32 %v1283, %v1269
        %v1285 = vrot.slane %v1284, 4
        %v1286 = vadd.f32 %v1284, %v1285
        %v1287 = vrot.slane %v1286, 2
        %v1288 = vadd.f32 %v1286, %v1287
        %v1289 = vrot.slane %v1288, 1
        %v1290 = vadd.f32 %v1288, %v1289
        %v1291 = vmul.f32 %v1253, 0.0078125
        %v1292 = vmul.f32 %v1290, 0.0078125
        %v1293 = vmul.f32 %v1291, %v1291
        %v1294 = vsub.f32 %v1292, %v1293
        %v1295 = vmax.f32 %v1294, 0.0
        %v1296 = vadd.f32 %v1295, 1e-05
        %v1297 = vrsqrt.pop %v1296
        %v1298 = vmul.f32 %v383, %v1297
        %v1299 = vsub.f32 %v1217, %v1291
        %v1300 = vsub.f32 %v1218, %v1291
        %v1301 = vsub.f32 %v1219, %v1291
        %v1302 = vsub.f32 %v1220, %v1291
        %v1303 = vsub.f32 %v1221, %v1291
        %v1304 = vsub.f32 %v1222, %v1291
        %v1305 = vsub.f32 %v1223, %v1291
        %v1306 = vsub.f32 %v1224, %v1291
        %v1307 = vsub.f32 %v1225, %v1291
        %v1308 = vsub.f32 %v1226, %v1291
        %v1309 = vsub.f32 %v1227, %v1291
        %v1310 = vsub.f32 %v1228, %v1291
        %v1311 = vsub.f32 %v1229, %v1291
        %v1312 = vsub.f32 %v1230, %v1291
        %v1313 = vsub.f32 %v1231, %v1291
        %v1314 = vsub.f32 %v1232, %v1291
        %v1315 = vlaneseq
        %v1316 = vshrl.u32 %v1315, 7
        %v1317 = vsub.s32 0, %v1316
        %v1318 = vrot.slane %v1298, %v1317
        %v1319 = vmul.f32 %v1299, %v1318
        %v1320 = vmul.f32 %v1300, %v1318
        %v1321 = vmul.f32 %v1301, %v1318
        %v1322 = vmul.f32 %v1302, %v1318
        %v1323 = vmul.f32 %v1303, %v1318
        %v1324 = vmul.f32 %v1304, %v1318
        %v1325 = vmul.f32 %v1305, %v1318
        %v1326 = vmul.f32 %v1306, %v1318
        %v1327 = vmul.f32 %v1307, %v1318
        %v1328 = vmul.f32 %v1308, %v1318
        %v1329 = vmul.f32 %v1309, %v1318
        %v1330 = vmul.f32 %v1310, %v1318
        %v1331 = vmul.f32 %v1311, %v1318
        %v1332 = vmul.f32 %v1312, %v1318
        %v1333 = vmul.f32 %v1313, %v1318
        %v1334 = vmul.f32 %v1314, %v1318
        %v1335 = vlaneseq
        %v1336 = vshrl.u32 %v1335, 7
        %v1337 = vsub.s32 0, %v1336
        %v1338 = vrot.slane %v384, %v1337
        %v1339 = vadd.f32 %v1319, %v1338
        %v1340 = vadd.f32 %v1320, %v1338
        %v1341 = vadd.f32 %v1321, %v1338
        %v1342 = vadd.f32 %v1322, %v1338
        %v1343 = vadd.f32 %v1323, %v1338
        %v1344 = vadd.f32 %v1324, %v1338
        %v1345 = vadd.f32 %v1325, %v1338
        %v1346 = vadd.f32 %v1326, %v1338
        %v1347 = vadd.f32 %v1327, %v1338
        %v1348 = vadd.f32 %v1328, %v1338
        %v1349 = vadd.f32 %v1329, %v1338
        %v1350 = vadd.f32 %v1330, %v1338
        %v1351 = vadd.f32 %v1331, %v1338
        %v1352 = vadd.f32 %v1332, %v1338
        %v1353 = vadd.f32 %v1333, %v1338
        %v1354 = vadd.f32 %v1334, %v1338
        %v1355 = vadd.f32 %v491, %v1339
        %v1356 = vadd.f32 %v492, %v1340
        %v1357 = vadd.f32 %v493, %v1341
        %v1358 = vadd.f32 %v494, %v1342
        %v1359 = vadd.f32 %v495, %v1343
        %v1360 = vadd.f32 %v496, %v1344
        %v1361 = vadd.f32 %v497, %v1345
        %v1362 = vadd.f32 %v498, %v1346
        %v1363 = vadd.f32 %v499, %v1347
        %v1364 = vadd.f32 %v500, %v1348
        %v1365 = vadd.f32 %v501, %v1349
        %v1366 = vadd.f32 %v502, %v1350
        %v1367 = vadd.f32 %v503, %v1351
        %v1368 = vadd.f32 %v504, %v1352
        %v1369 = vadd.f32 %v505, %v1353
        %v1370 = vadd.f32 %v506, %v1354
        %1371 = vst [vmem:[%s311] sm:$0xff] %v1355
        %1372 = vst [vmem:[%s311 + $0x8] sm:$0xff] %v1356
        %1373 = vst [vmem:[%s311 + $0x10] sm:$0xff] %v1357
        %1374 = vst [vmem:[%s311 + $0x18] sm:$0xff] %v1358
        %1375 = vst [vmem:[%s311 + $0x20] sm:$0xff] %v1359
        %1376 = vst [vmem:[%s311 + $0x28] sm:$0xff] %v1360
        %1377 = vst [vmem:[%s311 + $0x30] sm:$0xff] %v1361
        %1378 = vst [vmem:[%s311 + $0x38] sm:$0xff] %v1362
        %1379 = vst [vmem:[%s311 + $0x40] sm:$0xff] %v1363
        %1380 = vst [vmem:[%s311 + $0x48] sm:$0xff] %v1364
        %1381 = vst [vmem:[%s311 + $0x50] sm:$0xff] %v1365
        %1382 = vst [vmem:[%s311 + $0x58] sm:$0xff] %v1366
        %1383 = vst [vmem:[%s311 + $0x60] sm:$0xff] %v1367
        %1384 = vst [vmem:[%s311 + $0x68] sm:$0xff] %v1368
        %1385 = vst [vmem:[%s311 + $0x70] sm:$0xff] %v1369
        %1386 = vst [vmem:[%s311 + $0x78] sm:$0xff] %v1370
        %s1387 = sand.u32 %s149, 1
        %s1388 = scalar_lea.sflag [#allocation4], %s1387
        %s1389 = sand.u32 %s149, 1
        %s1390 = smul.addr %s1389, 128
        %s1391 = scalar_lea.vmem [#allocation10], %s1390
        // Predicated region
        $region57: #{tpu_custom_call.1} parent=39 // pred_check
          %p1392 = pneg %p159
        $region58: #{tpu_custom_call.1} parent=39 // pred_check_branch
          %1394 = sbr.rel (%p1392) target = $region60
        $region59: #{tpu_custom_call.1} parent=39 // pred_region
          %s1396 = ssub.s32 2048, 2048
          %1397 = vsyncadd %s1388, %s1396
          %s1398 = smul.addr %s26, 16
          %s1399 = smul.addr %s1398, 128
          %s1400 = scalar_lea.hbm %s5, %s1399
          %s1401 = sshll.u32 %s1391, 4
          %s1402 = int_to_ptr.vmem [resolvable:$true] %s1401
          %1407 = dma.vmem_to_hbm [thread:$0]  %s1402, 2048, %s1400, %s1388, 128, 128, 8
        $region60: #{tpu_custom_call.1} parent=39 // pred_fallthru
          _
      $region40: #{tpu_custom_call.1} parent=5 // pred_fallthru
        _
      %p1408 = scmp.le.s32.totalorder 2, %s21
      // Predicated region
      $region61: #{tpu_custom_call.1} parent=5 // pred_check
        %p1409 = pneg %p1408
      $region62: #{tpu_custom_call.1} parent=5 // pred_check_branch
        %1411 = sbr.rel (%p1409) target = $region64
      $region63: #{tpu_custom_call.1} parent=5 // pred_region
        %s1412 = ssub.s32 %s21, 2
        // Predicated region
        $region65: #{tpu_custom_call.1} parent=63 // pred_check
          %p1413 = pneg %p165
        $region66: #{tpu_custom_call.1} parent=63 // pred_check_branch
          %1415 = sbr.rel (%p1413) target = $region68
        $region67: #{tpu_custom_call.1} parent=63 // pred_region
          %s1416 = sand.u32 %s150, 1
          %s1417 = scalar_lea.sflag [#allocation4], %s1416
          %s1418 = sand.u32 %s150, 1
          %s1419 = smul.addr %s1418, 128
          %s1420 = scalar_lea.vmem [#allocation10], %s1419
          %1421 = dma.done %s1417, 2048
        $region68: #{tpu_custom_call.1} parent=63 // pred_fallthru
          _
      $region64: #{tpu_custom_call.1} parent=5 // pred_fallthru
        _
    $region6: #{tpu_custom_call.1} parent=1 // loop_footer
      %s25 = sadd.s32 1, %s21
    $region7: #{tpu_custom_call.1} parent=1 // loop_footer_branch
      %20 = sbr.rel target = $region3
    $region8: #{tpu_custom_call.1} parent=1 // loop_exit
      _
    %1422 = vsyncpa [#allocation3], 1
    %s1423 = scalar_lea.sflag [#allocation3], 1
    %1424 = vsyncpa %s1423, 1
    %1425 = vsyncpa [#allocation6], 1
    %s1426 = scalar_lea.sflag [#allocation6], 1
    %1427 = vsyncpa %s1426, 1
    %1428 = vsyncpa [#allocation9], 1
    %1429 = vsyncpa [#allocation4], 1
    %s1430 = scalar_lea.sflag [#allocation4], 1
    %1431 = vsyncpa %s1430, 1

</llo_original>
